<compile_context>
chip_gen: v5e
topology: v5e:2x2
jax: 0.10.0
libtpu: 0.0.40
codegen_flags: <defaults>
</compile_context>

<pallas_src>
import functools

import jax
import jax.numpy as jnp
import numpy as np
from jax import lax
from jax.experimental import pallas as pl
from jax.experimental.pallas import tpu as pltpu


def _recip(x):
    """EUP approximate reciprocal + one Newton step (rel. error ~ eps^2)."""
    r = pl.reciprocal(x, approx=True)
    return r * (2.0 - x * r)


# ----------------------------------------------------------------------------
# Fused kernel: qkv projection + linear attention (all heads) + out-proj + GN
# ----------------------------------------------------------------------------
def _fused_kernel(x_ref, wqkv_ref, wout_ref, bout_ref, gamma_ref, beta_ref,
                  mask_ref, out_ref, *, num_heads, dim_head, scale, eps):
    x = x_ref[0]                                                    # (C, N) f32
    c, n = x.shape
    hidden = num_heads * dim_head

    # One wide projection: (3*hidden, C) @ (C, N) -> (3*hidden, N).
    # K = C is tiny; kept on the MXU for lowering robustness (a K=4 contraction
    # is a few hundred cycles at these shapes and has no downstream consumer
    # to overlap with anyway).
    qkv = jnp.dot(wqkv_ref[...], x, preferred_element_type=jnp.float32)

    q_all = qkv[:hidden]                                            # (hidden, N)
    k_all = qkv[hidden:2 * hidden]
    v_all = qkv[2 * hidden:]

    # q: softmax over the head-dim axis (torch softmax(dim=-2)), segmented per
    # head via a sublane-split reshape; 1/sqrt(dim_head) folded into the
    # reciprocal multiply.
    q3 = q_all.reshape(num_heads, dim_head, n)
    q3 = jnp.exp(q3 - jnp.max(q3, axis=1, keepdims=True))
    q3 = q3 * (scale * _recip(jnp.sum(q3, axis=1, keepdims=True)))
    q_all = q3.reshape(hidden, n)

    # k: softmax over the sequence axis (torch softmax(dim=-1)) — row
    # independent, so one pass over the full (hidden, N) slab.
    k_all = jnp.exp(k_all - jnp.max(k_all, axis=1, keepdims=True))
    k_all = k_all * _recip(jnp.sum(k_all, axis=1, keepdims=True))

    # Attention as two full-width MXU matmuls + block-diagonal head mask.
    # context[e, d] = sum_n v[e, n] * k[d, n]
    context = lax.dot_general(v_all, k_all, (((1,), (1,)), ((), ())),
                              preferred_element_type=jnp.float32)   # (hid, hid)
    context = context * mask_ref[...]          # zero cross-head blocks
    # attn[e, n] = sum_d context[e, d] * q[d, n]
    attn = jnp.dot(context, q_all, preferred_element_type=jnp.float32)

    # Output projection: (C, hidden) @ (hidden, N) + bias
    y = jnp.dot(wout_ref[...], attn, preferred_element_type=jnp.float32)
    y = y + bout_ref[...]                                           # (C, N)

    # GroupNorm(1, C) == layer-norm over all (C, N) elements — single pass.
    inv_cnt = 1.0 / float(c * n)
    mean = jnp.sum(y) * inv_cnt
    var = jnp.sum(y * y) * inv_cnt - mean * mean
    y = (y - mean) * lax.rsqrt(var + eps)

    out_ref[0] = y * gamma_ref[...] + beta_ref[...]


# ----------------------------------------------------------------------------
# Wrapper
# ----------------------------------------------------------------------------
def linear_attention(x, params, *, num_heads=4, dim_head=32):
    b, c, h, w = x.shape
    n = h * w
    hidden = num_heads * dim_head
    scale = 1.0 / (dim_head ** 0.5)

    x_flat = x.reshape(b, c, n)

    # Static block-diagonal per-head mask (host-side constant; avoids in-kernel
    # integer division / select and keeps heads from leaking into each other).
    head_id = np.arange(hidden) // dim_head
    mask = jnp.asarray((head_id[:, None] == head_id[None, :]).astype(np.float32))

    out = pl.pallas_call(
        functools.partial(_fused_kernel, num_heads=num_heads,
                          dim_head=dim_head, scale=scale, eps=1e-5),
        out_shape=jax.ShapeDtypeStruct((b, c, n), jnp.float32),
        grid_spec=pltpu.PrefetchScalarGridSpec(
            num_scalar_prefetch=0,
            grid=(b,),
            in_specs=[
                pl.BlockSpec((1, c, n), lambda bi: (bi, 0, 0)),          # x
                pl.BlockSpec((3 * hidden, c), lambda bi: (0, 0)),        # w_qkv
                pl.BlockSpec((c, hidden), lambda bi: (0, 0)),            # w_out
                pl.BlockSpec((c, 1), lambda bi: (0, 0)),                 # b_out
                pl.BlockSpec((c, 1), lambda bi: (0, 0)),                 # gamma
                pl.BlockSpec((c, 1), lambda bi: (0, 0)),                 # beta
                pl.BlockSpec((hidden, hidden), lambda bi: (0, 0)),       # head mask
            ],
            out_specs=pl.BlockSpec((1, c, n), lambda bi: (bi, 0, 0)),
        ),
        compiler_params=pltpu.CompilerParams(
            dimension_semantics=("parallel",)),
    )(x_flat, params["w_qkv"], params["w_out"], params["b_out"],
      params["gn_gamma"], params["gn_beta"], mask)

    return out.reshape(b, c, h, w)


# ----------------------------------------------------------------------------
# Pure-JAX reference (mirrors the PyTorch forward exactly)
# ----------------------------------------------------------------------------
def linear_attention_ref(x, params, *, num_heads=4, dim_head=32):
    b, c, h, w = x.shape
    n = h * w
    hidden = num_heads * dim_head
    scale = 1.0 / (dim_head ** 0.5)

    xf = x.reshape(b, c, n)
    qkv = jnp.einsum("oc,bcn->bon", params["w_qkv"], xf)
    q, k, v = jnp.split(qkv, 3, axis=1)
    q = q.reshape(b, num_heads, dim_head, n)
    k = k.reshape(b, num_heads, dim_head, n)
    v = v.reshape(b, num_heads, dim_head, n)

    q = jax.nn.softmax(q, axis=-2) * scale
    k = jax.nn.softmax(k, axis=-1)

    context = jnp.einsum("bhdn,bhen->bhde", k, v)
    out = jnp.einsum("bhde,bhdn->bhen", context, q)
    out = out.reshape(b, hidden, n)

    y = jnp.einsum("ch,bhn->bcn", params["w_out"], out) + params["b_out"][None]
    mean = y.mean(axis=(1, 2), keepdims=True)
    var = ((y - mean) ** 2).mean(axis=(1, 2), keepdims=True)
    y = (y - mean) / jnp.sqrt(var + 1e-5)
    y = y * params["gn_gamma"][None] + params["gn_beta"][None]
    return y.reshape(b, c, h, w)


# ----------------------------------------------------------------------------
# Main
# ----------------------------------------------------------------------------
if __name__ == "__main__":
    B, C, H, W = 2, 4, 16, 16
    NUM_HEADS, DIM_HEAD = 4, 32
    HIDDEN = NUM_HEADS * DIM_HEAD

    key = jax.random.PRNGKey(0)
    k_x, k_qkv, k_wo, k_bo, k_g, k_b = jax.random.split(key, 6)

    x = jax.random.normal(k_x, (B, C, H, W), dtype=jnp.float32)

    # Deterministic synthetic parameters (shapes from the nn.Module __init__).
    params = {
        # Conv2d(C, 3*hidden, 1, bias=False).weight -> (3*hidden, C)
        "w_qkv": jax.random.normal(k_qkv, (3 * HIDDEN, C), jnp.float32) * 0.2,
        # Conv2d(hidden, C, 1).weight -> (C, hidden), .bias -> (C, 1)
        "w_out": jax.random.normal(k_wo, (C, HIDDEN), jnp.float32) * 0.1,
        "b_out": jax.random.normal(k_bo, (C, 1), jnp.float32) * 0.1,
        # GroupNorm(1, C) affine params
        "gn_gamma": 1.0 + 0.1 * jax.random.normal(k_g, (C, 1), jnp.float32),
        "gn_beta": 0.1 * jax.random.normal(k_b, (C, 1), jnp.float32),
    }

    out = linear_attention(x, params, num_heads=NUM_HEADS, dim_head=DIM_HEAD)
    out = jax.block_until_ready(out)

    ref = jax.block_until_ready(
        linear_attention_ref(x, params, num_heads=NUM_HEADS, dim_head=DIM_HEAD))

    assert out.shape == (B, C, H, W)
    np.testing.assert_allclose(np.asarray(out), np.asarray(ref),
                               rtol=1e-4, atol=1e-4)
    print("KERNEL_OK")
</pallas_src>

<mosaic_0001>
module attributes {stable_mosaic.version = 11 : i64} {
  func.func @_fused_kernel(%arg0: i32, %arg1: memref<1x4x256xf32, #tpu.memory_space<vmem>>, %arg2: memref<384x4xf32, #tpu.memory_space<vmem>>, %arg3: memref<4x128xf32, #tpu.memory_space<vmem>>, %arg4: memref<4x1xf32, #tpu.memory_space<vmem>>, %arg5: memref<4x1xf32, #tpu.memory_space<vmem>>, %arg6: memref<4x1xf32, #tpu.memory_space<vmem>>, %arg7: memref<128x128xf32, #tpu.memory_space<vmem>>, %arg8: memref<1x4x256xf32, #tpu.memory_space<vmem>>) attributes {dimension_semantics = [#tpu.dimension_semantics<parallel>], iteration_bounds = array<i64: 2>, scalar_prefetch = 0 : i64, scratch_operands = 0 : i64, tpu.core_type = #tpu.core_type<tc>, window_params = [{transform_indices = @transform_0, window_bounds = array<i64: 1, 4, 256>}, {pipeline_mode = #tpu.pipeline_mode<synchronous>, transform_indices = @transform_1, window_bounds = array<i64: 384, 4>}, {pipeline_mode = #tpu.pipeline_mode<synchronous>, transform_indices = @transform_2, window_bounds = array<i64: 4, 128>}, {pipeline_mode = #tpu.pipeline_mode<synchronous>, transform_indices = @transform_3, window_bounds = array<i64: 4, 1>}, {pipeline_mode = #tpu.pipeline_mode<synchronous>, transform_indices = @transform_4, window_bounds = array<i64: 4, 1>}, {pipeline_mode = #tpu.pipeline_mode<synchronous>, transform_indices = @transform_5, window_bounds = array<i64: 4, 1>}, {pipeline_mode = #tpu.pipeline_mode<synchronous>, transform_indices = @transform_6, window_bounds = array<i64: 128, 128>}, {transform_indices = @transform_7, window_bounds = array<i64: 1, 4, 256>}]} {
    %c0 = arith.constant 0 : index
    %c0_0 = arith.constant 0 : index
    %c0_1 = arith.constant 0 : index
    %0 = vector.load %arg1[%c0, %c0_0, %c0_1] : memref<1x4x256xf32, #tpu.memory_space<vmem>>, vector<1x4x256xf32>
    %1 = vector.shape_cast %0 : vector<1x4x256xf32> to vector<4x256xf32>
    %c0_2 = arith.constant 0 : index
    %c0_3 = arith.constant 0 : index
    %2 = vector.load %arg2[%c0_2, %c0_3] : memref<384x4xf32, #tpu.memory_space<vmem>>, vector<384x4xf32>
    %cst = arith.constant dense<0.000000e+00> : vector<384x256xf32>
    %3 = tpu.matmul %2, %1, %cst {dimension_numbers = #tpu.dot_dimension_numbers<[1], [0], [0], [1], [0, 0, 1, 1], [], []>} : vector<384x4xf32>, vector<4x256xf32>, vector<384x256xf32> -> vector<384x256xf32>
    %4 = vector.extract_strided_slice %3 {offsets = [0, 0], sizes = [128, 256], strides = [1, 1]} : vector<384x256xf32> to vector<128x256xf32>
    %5 = vector.extract_strided_slice %3 {offsets = [128, 0], sizes = [128, 256], strides = [1, 1]} : vector<384x256xf32> to vector<128x256xf32>
    %6 = vector.extract_strided_slice %3 {offsets = [256, 0], sizes = [128, 256], strides = [1, 1]} : vector<384x256xf32> to vector<128x256xf32>
    %7 = vector.shape_cast %4 : vector<128x256xf32> to vector<4x32x256xf32>
    %cst_4 = arith.constant dense<0xFF800000> : vector<4x256xf32>
    %8 = vector.multi_reduction <maximumf>, %7, %cst_4 [1] : vector<4x32x256xf32> to vector<4x256xf32>
    %9 = vector.shape_cast %8 : vector<4x256xf32> to vector<4x1x256xf32>
    %10 = vector.broadcast %9 : vector<4x1x256xf32> to vector<4x32x256xf32>
    %11 = arith.subf %7, %10 : vector<4x32x256xf32>
    %12 = math.exp %11 : vector<4x32x256xf32>
    %cst_5 = arith.constant dense<0.000000e+00> : vector<4x256xf32>
    %13 = vector.multi_reduction <add>, %12, %cst_5 [1] : vector<4x32x256xf32> to vector<4x256xf32>
    %14 = vector.shape_cast %13 : vector<4x256xf32> to vector<4x1x256xf32>
    %15 = tpu.reciprocal %14 {approx = true} : vector<4x1x256xf32> -> vector<4x1x256xf32>
    %16 = arith.mulf %14, %15 : vector<4x1x256xf32>
    %cst_6 = arith.constant 2.000000e+00 : f32
    %17 = vector.broadcast %cst_6 : f32 to vector<4x1x256xf32>
    %18 = arith.subf %17, %16 : vector<4x1x256xf32>
    %19 = arith.mulf %15, %18 : vector<4x1x256xf32>
    %cst_7 = arith.constant 0.176776692 : f32
    %20 = vector.broadcast %cst_7 : f32 to vector<4x1x256xf32>
    %21 = arith.mulf %20, %19 : vector<4x1x256xf32>
    %22 = vector.broadcast %21 : vector<4x1x256xf32> to vector<4x32x256xf32>
    %23 = arith.mulf %12, %22 : vector<4x32x256xf32>
    %24 = vector.shape_cast %23 : vector<4x32x256xf32> to vector<128x256xf32>
    %cst_8 = arith.constant dense<0xFF800000> : vector<128xf32>
    %25 = vector.multi_reduction <maximumf>, %5, %cst_8 [1] : vector<128x256xf32> to vector<128xf32>
    %26 = vector.shape_cast %25 : vector<128xf32> to vector<128x1xf32>
    %27 = vector.broadcast %26 : vector<128x1xf32> to vector<128x256xf32>
    %28 = arith.subf %5, %27 : vector<128x256xf32>
    %29 = math.exp %28 : vector<128x256xf32>
    %cst_9 = arith.constant dense<0.000000e+00> : vector<128xf32>
    %30 = vector.multi_reduction <add>, %29, %cst_9 [1] : vector<128x256xf32> to vector<128xf32>
    %31 = vector.shape_cast %30 : vector<128xf32> to vector<128x1xf32>
    %32 = tpu.reciprocal %31 {approx = true} : vector<128x1xf32> -> vector<128x1xf32>
    %33 = arith.mulf %31, %32 : vector<128x1xf32>
    %cst_10 = arith.constant 2.000000e+00 : f32
    %34 = vector.broadcast %cst_10 : f32 to vector<128x1xf32>
    %35 = arith.subf %34, %33 : vector<128x1xf32>
    %36 = arith.mulf %32, %35 : vector<128x1xf32>
    %37 = vector.broadcast %36 : vector<128x1xf32> to vector<128x256xf32>
    %38 = arith.mulf %29, %37 : vector<128x256xf32>
    %cst_11 = arith.constant dense<0.000000e+00> : vector<128x128xf32>
    %39 = tpu.matmul %6, %38, %cst_11 {dimension_numbers = #tpu.dot_dimension_numbers<[1], [1], [0], [0], [0, 0, 1, 0], [], []>} : vector<128x256xf32>, vector<128x256xf32>, vector<128x128xf32> -> vector<128x128xf32>
    %c0_12 = arith.constant 0 : index
    %c0_13 = arith.constant 0 : index
    %40 = vector.load %arg7[%c0_12, %c0_13] : memref<128x128xf32, #tpu.memory_space<vmem>>, vector<128x128xf32>
    %41 = arith.mulf %39, %40 : vector<128x128xf32>
    %cst_14 = arith.constant dense<0.000000e+00> : vector<128x256xf32>
    %42 = tpu.matmul %41, %24, %cst_14 {dimension_numbers = #tpu.dot_dimension_numbers<[1], [0], [0], [1], [0, 0, 1, 1], [], []>} : vector<128x128xf32>, vector<128x256xf32>, vector<128x256xf32> -> vector<128x256xf32>
    %c0_15 = arith.constant 0 : index
    %c0_16 = arith.constant 0 : index
    %43 = vector.load %arg3[%c0_15, %c0_16] : memref<4x128xf32, #tpu.memory_space<vmem>>, vector<4x128xf32>
    %cst_17 = arith.constant dense<0.000000e+00> : vector<4x256xf32>
    %44 = tpu.matmul %43, %42, %cst_17 {dimension_numbers = #tpu.dot_dimension_numbers<[1], [0], [0], [1], [0, 0, 1, 1], [], []>} : vector<4x128xf32>, vector<128x256xf32>, vector<4x256xf32> -> vector<4x256xf32>
    %c0_18 = arith.constant 0 : index
    %c0_19 = arith.constant 0 : index
    %45 = vector.load %arg4[%c0_18, %c0_19] : memref<4x1xf32, #tpu.memory_space<vmem>>, vector<4x1xf32>
    %46 = vector.broadcast %45 : vector<4x1xf32> to vector<4x256xf32>
    %47 = arith.addf %44, %46 : vector<4x256xf32>
    %48 = vector.shape_cast %47 : vector<4x256xf32> to vector<1x4x256xf32>
    %cst_20 = arith.constant dense<0.000000e+00> : vector<1xf32>
    %49 = vector.multi_reduction <add>, %48, %cst_20 [1, 2] : vector<1x4x256xf32> to vector<1xf32>
    %50 = vector.shape_cast %49 : vector<1xf32> to vector<1x1x1xf32>
    %51 = vector.extract %50[0, 0, 0] : f32 from vector<1x1x1xf32>
    %cst_21 = arith.constant 9.765625E-4 : f32
    %52 = arith.mulf %51, %cst_21 : f32
    %53 = arith.mulf %47, %47 : vector<4x256xf32>
    %54 = vector.shape_cast %53 : vector<4x256xf32> to vector<1x4x256xf32>
    %cst_22 = arith.constant dense<0.000000e+00> : vector<1xf32>
    %55 = vector.multi_reduction <add>, %54, %cst_22 [1, 2] : vector<1x4x256xf32> to vector<1xf32>
    %56 = vector.shape_cast %55 : vector<1xf32> to vector<1x1x1xf32>
    %57 = vector.extract %56[0, 0, 0] : f32 from vector<1x1x1xf32>
    %cst_23 = arith.constant 9.765625E-4 : f32
    %58 = arith.mulf %57, %cst_23 : f32
    %59 = arith.mulf %52, %52 : f32
    %60 = arith.subf %58, %59 : f32
    %61 = vector.broadcast %52 : f32 to vector<4x256xf32>
    %62 = arith.subf %47, %61 : vector<4x256xf32>
    %cst_24 = arith.constant 9.99999974E-6 : f32
    %63 = arith.addf %60, %cst_24 : f32
    %64 = math.rsqrt %63 : f32
    %65 = vector.broadcast %64 : f32 to vector<4x256xf32>
    %66 = arith.mulf %62, %65 : vector<4x256xf32>
    %c0_25 = arith.constant 0 : index
    %c0_26 = arith.constant 0 : index
    %67 = vector.load %arg5[%c0_25, %c0_26] : memref<4x1xf32, #tpu.memory_space<vmem>>, vector<4x1xf32>
    %68 = vector.broadcast %67 : vector<4x1xf32> to vector<4x256xf32>
    %69 = arith.mulf %66, %68 : vector<4x256xf32>
    %c0_27 = arith.constant 0 : index
    %c0_28 = arith.constant 0 : index
    %70 = vector.load %arg6[%c0_27, %c0_28] : memref<4x1xf32, #tpu.memory_space<vmem>>, vector<4x1xf32>
    %71 = vector.broadcast %70 : vector<4x1xf32> to vector<4x256xf32>
    %72 = arith.addf %69, %71 : vector<4x256xf32>
    %c0_29 = arith.constant 0 : index
    %c0_30 = arith.constant 0 : index
    %c0_31 = arith.constant 0 : index
    %73 = vector.load %arg8[%c0_29, %c0_30, %c0_31] : memref<1x4x256xf32, #tpu.memory_space<vmem>>, vector<1x4x256xf32>
    %74 = vector.shape_cast %73 : vector<1x4x256xf32> to vector<4x256xf32>
    %75 = vector.shape_cast %72 : vector<4x256xf32> to vector<1x4x256xf32>
    tpu.vector_store %arg8[%c0_29, %c0_30, %c0_31], %75 {strides = array<i32>} : memref<1x4x256xf32, #tpu.memory_space<vmem>>, vector<1x4x256xf32>,
    return
  }
  func.func @transform_0(%arg0: i32) -> (i32, i32, i32) {
    %c0_i32 = arith.constant 0 : i32
    %c0_i32_0 = arith.constant 0 : i32
    %c0_i32_1 = arith.constant 0 : i32
    return %arg0, %c0_i32, %c0_i32_0 : i32, i32, i32
  }
  func.func @transform_1(%arg0: i32) -> (i32, i32) {
    %c0_i32 = arith.constant 0 : i32
    %c0_i32_0 = arith.constant 0 : i32
    %c0_i32_1 = arith.constant 0 : i32
    return %c0_i32, %c0_i32_0 : i32, i32
  }
  func.func @transform_2(%arg0: i32) -> (i32, i32) {
    %c0_i32 = arith.constant 0 : i32
    %c0_i32_0 = arith.constant 0 : i32
    %c0_i32_1 = arith.constant 0 : i32
    return %c0_i32, %c0_i32_0 : i32, i32
  }
  func.func @transform_3(%arg0: i32) -> (i32, i32) {
    %c0_i32 = arith.constant 0 : i32
    %c0_i32_0 = arith.constant 0 : i32
    %c0_i32_1 = arith.constant 0 : i32
    return %c0_i32, %c0_i32_0 : i32, i32
  }
  func.func @transform_4(%arg0: i32) -> (i32, i32) {
    %c0_i32 = arith.constant 0 : i32
    %c0_i32_0 = arith.constant 0 : i32
    %c0_i32_1 = arith.constant 0 : i32
    return %c0_i32, %c0_i32_0 : i32, i32
  }
  func.func @transform_5(%arg0: i32) -> (i32, i32) {
    %c0_i32 = arith.constant 0 : i32
    %c0_i32_0 = arith.constant 0 : i32
    %c0_i32_1 = arith.constant 0 : i32
    return %c0_i32, %c0_i32_0 : i32, i32
  }
  func.func @transform_6(%arg0: i32) -> (i32, i32) {
    %c0_i32 = arith.constant 0 : i32
    %c0_i32_0 = arith.constant 0 : i32
    %c0_i32_1 = arith.constant 0 : i32
    return %c0_i32, %c0_i32_0 : i32, i32
  }
  func.func @transform_7(%arg0: i32) -> (i32, i32, i32) {
    %c0_i32 = arith.constant 0 : i32
    %c0_i32_0 = arith.constant 0 : i32
    %c0_i32_1 = arith.constant 0 : i32
    return %arg0, %c0_i32, %c0_i32_0 : i32, i32, i32
  }
}

</mosaic_0001>

<llo_original>
// kernel: tpu_custom_call.1
$region0: #{tpu_custom_call.1}
  #allocation0 [shape = 'u32[]', space=smem, size = 0x4, offset = 0x4, fixed_abs, tag = 'smem constant byte address 0x4 - core index']
  #allocation1 [shape = 'u32[72,128]{1,0:T(1,128)}', space=vmem, size = 0x9000, scoped, tag = 'internal scratch']
  %s0 = inlined_call_operand.vmem [shape: f32[2,4,256], index: 0, kind: input, shape index: {}]
  %s1 = inlined_call_operand.vmem [shape: f32[384,4], index: 1, kind: input, shape index: {}]
  %s2 = inlined_call_operand.vmem [shape: f32[4,128], index: 2, kind: input, shape index: {}]
  %s3 = inlined_call_operand.vmem [shape: f32[4,1], index: 3, kind: input, shape index: {}]
  %s4 = inlined_call_operand.vmem [shape: f32[4,1], index: 4, kind: input, shape index: {}]
  %s5 = inlined_call_operand.vmem [shape: f32[4,1], index: 5, kind: input, shape index: {}]
  %s6 = inlined_call_operand.vmem [shape: f32[128,128], index: 6, kind: input, shape index: {}]
  %s7 = inlined_call_operand.hbm [shape: f32[2,4,256], index: 7, kind: output, shape index: {}]
  %s8 = sld [smem:[#allocation0]]
  $region61: #{tpu_custom_call.1} parent=0
    _
  %s10 = ssub.s32 1, %s8
  %s11 = scalar_select 0, %s10, %s8
  $region1: #{tpu_custom_call.1} parent=0
    #allocation2 [shape = 'u8[8192]{0}', space=vmem, size = 0x2000, scoped, tag = 'output window, operand 0']
    #allocation3 [shape = 's32[2]{0}', space=sflag, size = 0x8, scoped, tag = 'scoped memory for tpu_custom_call.1']
    %12 = vsyncpa [#allocation3], 0
    %s13 = scalar_lea.sflag [#allocation3], 1
    %14 = vsyncpa %s13, 0
    loop: start=0, step=1, limit=4
    $region2: #{tpu_custom_call.1} parent=1 // loop_pre_header
      _
    $region3: #{tpu_custom_call.1} parent=1 // loop_header
      %s16 = sphi 0, %s20
      %p17 = scmp.ge.s32.totalorder %s16, 4
      %s26 = sphi 0, %s28
      %s29 = sphi 0, %s26
      %s30 = sphi 0, %s29
      %s46 = sphi 0, %s30
      %s50 = sphi 0, %s50
      %s52 = sphi 0, %s50
      %s53 = sphi 0, %s52
      %s67 = sphi 0, %s53
      %s71 = sphi 0, %s71
      %s73 = sphi 0, %s71
      %s74 = sphi 0, %s73
      %s88 = sphi 0, %s74
      %s92 = sphi 0, %s92
      %s94 = sphi 0, %s92
      %s95 = sphi 0, %s94
      %s109 = sphi 0, %s95
      %s113 = sphi 0, %s113
      %s115 = sphi 0, %s113
      %s116 = sphi 0, %s115
      %s130 = sphi 0, %s116
      %s134 = sphi 0, %s134
      %s136 = sphi 0, %s134
      %s137 = sphi 0, %s136
      %s151 = sphi 0, %s137
      %s155 = sphi 0, %s155
      %s157 = sphi 0, %s155
      %s158 = sphi 0, %s157
      %s172 = sphi 0, %s158
      %s178 = sphi 0, %s180
      %s181 = sphi 0, %s178
      %s182 = sphi 0, %s181
      %s198 = sphi 0, %s182
    $region4: #{tpu_custom_call.1} parent=1 // loop_header_branch
      %19 = sbr.rel (%p17) target = $region8
    $region5: #{tpu_custom_call.1} parent=1 // loop_body
      %s21 = ssub.s32 %s16, 1
      %s22 = ssub.s32 %s16, 2
      %s23 = sadd.s32 %s16, 1
      %s24 = ssub.s32 %s16, %s23
      %p25 = scmp.eq.s32.totalorder %s24, 0
      %s27 = sadd.s32 %s26, 1
      %s28 = scalar_select %p25, %s26, %s27
      %p31 = pneg %p25
      %p32 = scmp.eq.s32.totalorder %s16, 1
      %p33 = por %p31, %p32
      %p34 = scmp.ne.s32.totalorder %s26, %s29
      %p35 = scmp.eq.s32.totalorder %s16, 0
      %p36 = por %p34, %p35
      %p37 = scmp.ne.s32.totalorder %s26, %s29
      %p38 = scmp.eq.s32.totalorder %s21, 1
      %p39 = por %p37, %p38
      %p40 = scmp.ne.s32.totalorder %s29, %s30
      %p41 = scmp.eq.s32.totalorder %s21, 0
      %p42 = por %p40, %p41
      %p43 = scmp.ne.s32.totalorder %s29, %s30
      %p44 = scmp.eq.s32.totalorder %s22, 1
      %p45 = por %p43, %p44
      %p47 = scmp.ne.s32.totalorder %s30, %s46
      %p48 = scmp.eq.s32.totalorder %s22, 0
      %p49 = por %p47, %p48
      %s51 = sadd.s32 %s50, 1
      %p54 = scmp.eq.s32.totalorder %s16, 1
      %p55 = scmp.ne.s32.totalorder %s50, %s52
      %p56 = scmp.eq.s32.totalorder %s16, 0
      %p57 = por %p55, %p56
      %p58 = scmp.ne.s32.totalorder %s50, %s52
      %p59 = scmp.eq.s32.totalorder %s21, 1
      %p60 = por %p58, %p59
      %p61 = scmp.ne.s32.totalorder %s52, %s53
      %p62 = scmp.eq.s32.totalorder %s21, 0
      %p63 = por %p61, %p62
      %p64 = scmp.ne.s32.totalorder %s52, %s53
      %p65 = scmp.eq.s32.totalorder %s22, 1
      %p66 = por %p64, %p65
      %p68 = scmp.ne.s32.totalorder %s53, %s67
      %p69 = scmp.eq.s32.totalorder %s22, 0
      %p70 = por %p68, %p69
      %s72 = sadd.s32 %s71, 1
      %p75 = scmp.eq.s32.totalorder %s16, 1
      %p76 = scmp.ne.s32.totalorder %s71, %s73
      %p77 = scmp.eq.s32.totalorder %s16, 0
      %p78 = por %p76, %p77
      %p79 = scmp.ne.s32.totalorder %s71, %s73
      %p80 = scmp.eq.s32.totalorder %s21, 1
      %p81 = por %p79, %p80
      %p82 = scmp.ne.s32.totalorder %s73, %s74
      %p83 = scmp.eq.s32.totalorder %s21, 0
      %p84 = por %p82, %p83
      %p85 = scmp.ne.s32.totalorder %s73, %s74
      %p86 = scmp.eq.s32.totalorder %s22, 1
      %p87 = por %p85, %p86
      %p89 = scmp.ne.s32.totalorder %s74, %s88
      %p90 = scmp.eq.s32.totalorder %s22, 0
      %p91 = por %p89, %p90
      %s93 = sadd.s32 %s92, 1
      %p96 = scmp.eq.s32.totalorder %s16, 1
      %p97 = scmp.ne.s32.totalorder %s92, %s94
      %p98 = scmp.eq.s32.totalorder %s16, 0
      %p99 = por %p97, %p98
      %p100 = scmp.ne.s32.totalorder %s92, %s94
      %p101 = scmp.eq.s32.totalorder %s21, 1
      %p102 = por %p100, %p101
      %p103 = scmp.ne.s32.totalorder %s94, %s95
      %p104 = scmp.eq.s32.totalorder %s21, 0
      %p105 = por %p103, %p104
      %p106 = scmp.ne.s32.totalorder %s94, %s95
      %p107 = scmp.eq.s32.totalorder %s22, 1
      %p108 = por %p106, %p107
      %p110 = scmp.ne.s32.totalorder %s95, %s109
      %p111 = scmp.eq.s32.totalorder %s22, 0
      %p112 = por %p110, %p111
      %s114 = sadd.s32 %s113, 1
      %p117 = scmp.eq.s32.totalorder %s16, 1
      %p118 = scmp.ne.s32.totalorder %s113, %s115
      %p119 = scmp.eq.s32.totalorder %s16, 0
      %p120 = por %p118, %p119
      %p121 = scmp.ne.s32.totalorder %s113, %s115
      %p122 = scmp.eq.s32.totalorder %s21, 1
      %p123 = por %p121, %p122
      %p124 = scmp.ne.s32.totalorder %s115, %s116
      %p125 = scmp.eq.s32.totalorder %s21, 0
      %p126 = por %p124, %p125
      %p127 = scmp.ne.s32.totalorder %s115, %s116
      %p128 = scmp.eq.s32.totalorder %s22, 1
      %p129 = por %p127, %p128
      %p131 = scmp.ne.s32.totalorder %s116, %s130
      %p132 = scmp.eq.s32.totalorder %s22, 0
      %p133 = por %p131, %p132
      %s135 = sadd.s32 %s134, 1
      %p138 = scmp.eq.s32.totalorder %s16, 1
      %p139 = scmp.ne.s32.totalorder %s134, %s136
      %p140 = scmp.eq.s32.totalorder %s16, 0
      %p141 = por %p139, %p140
      %p142 = scmp.ne.s32.totalorder %s134, %s136
      %p143 = scmp.eq.s32.totalorder %s21, 1
      %p144 = por %p142, %p143
      %p145 = scmp.ne.s32.totalorder %s136, %s137
      %p146 = scmp.eq.s32.totalorder %s21, 0
      %p147 = por %p145, %p146
      %p148 = scmp.ne.s32.totalorder %s136, %s137
      %p149 = scmp.eq.s32.totalorder %s22, 1
      %p150 = por %p148, %p149
      %p152 = scmp.ne.s32.totalorder %s137, %s151
      %p153 = scmp.eq.s32.totalorder %s22, 0
      %p154 = por %p152, %p153
      %s156 = sadd.s32 %s155, 1
      %p159 = scmp.eq.s32.totalorder %s16, 1
      %p160 = scmp.ne.s32.totalorder %s155, %s157
      %p161 = scmp.eq.s32.totalorder %s16, 0
      %p162 = por %p160, %p161
      %p163 = scmp.ne.s32.totalorder %s155, %s157
      %p164 = scmp.eq.s32.totalorder %s21, 1
      %p165 = por %p163, %p164
      %p166 = scmp.ne.s32.totalorder %s157, %s158
      %p167 = scmp.eq.s32.totalorder %s21, 0
      %p168 = por %p166, %p167
      %p169 = scmp.ne.s32.totalorder %s157, %s158
      %p170 = scmp.eq.s32.totalorder %s22, 1
      %p171 = por %p169, %p170
      %p173 = scmp.ne.s32.totalorder %s158, %s172
      %p174 = scmp.eq.s32.totalorder %s22, 0
      %p175 = por %p173, %p174
      %s176 = ssub.s32 %s16, %s23
      %p177 = scmp.eq.s32.totalorder %s176, 0
      %s179 = sadd.s32 %s178, 1
      %s180 = scalar_select %p177, %s178, %s179
      %p183 = pneg %p177
      %p184 = scmp.eq.s32.totalorder %s16, 1
      %p185 = por %p183, %p184
      %p186 = scmp.ne.s32.totalorder %s178, %s181
      %p187 = scmp.eq.s32.totalorder %s16, 0
      %p188 = por %p186, %p187
      %p189 = scmp.ne.s32.totalorder %s178, %s181
      %p190 = scmp.eq.s32.totalorder %s21, 1
      %p191 = por %p189, %p190
      %p192 = scmp.ne.s32.totalorder %s181, %s182
      %p193 = scmp.eq.s32.totalorder %s21, 0
      %p194 = por %p192, %p193
      %p195 = scmp.ne.s32.totalorder %s181, %s182
      %p196 = scmp.eq.s32.totalorder %s22, 1
      %p197 = por %p195, %p196
      %p199 = scmp.ne.s32.totalorder %s182, %s198
      %p200 = scmp.eq.s32.totalorder %s22, 0
      %p201 = por %p199, %p200
      %p202 = scmp.le.s32.totalorder 1, %s16
      %p203 = scmp.lt.s32.totalorder %s16, 3
      %p204 = pnand %p202, %p203
      %p205 = pneg %p204
      // Predicated region
      $region9: #{tpu_custom_call.1} parent=5 // pred_check
        _
      $region10: #{tpu_custom_call.1} parent=5 // pred_check_branch
        %207 = sbr.rel (%p204) target = $region12
      $region11: #{tpu_custom_call.1} parent=5 // pred_region
        %s208 = ssub.s32 %s16, 1
        // Predicated region
        $region13: #{tpu_custom_call.1} parent=11 // pred_check
          %p209 = pneg %p63
        $region14: #{tpu_custom_call.1} parent=11 // pred_check_branch
          %211 = sbr.rel (%p209) target = $region16
        $region15: #{tpu_custom_call.1} parent=11 // pred_region
          _
        $region16: #{tpu_custom_call.1} parent=11 // pred_fallthru
          _
        // Predicated region
        $region17: #{tpu_custom_call.1} parent=11 // pred_check
          %p212 = pneg %p84
        $region18: #{tpu_custom_call.1} parent=11 // pred_check_branch
          %214 = sbr.rel (%p212) target = $region20
        $region19: #{tpu_custom_call.1} parent=11 // pred_region
          _
        $region20: #{tpu_custom_call.1} parent=11 // pred_fallthru
          _
        // Predicated region
        $region21: #{tpu_custom_call.1} parent=11 // pred_check
          %p215 = pneg %p105
        $region22: #{tpu_custom_call.1} parent=11 // pred_check_branch
          %217 = sbr.rel (%p215) target = $region24
        $region23: #{tpu_custom_call.1} parent=11 // pred_region
          _
        $region24: #{tpu_custom_call.1} parent=11 // pred_fallthru
          _
        // Predicated region
        $region25: #{tpu_custom_call.1} parent=11 // pred_check
          %p218 = pneg %p126
        $region26: #{tpu_custom_call.1} parent=11 // pred_check_branch
          %220 = sbr.rel (%p218) target = $region28
        $region27: #{tpu_custom_call.1} parent=11 // pred_region
          _
        $region28: #{tpu_custom_call.1} parent=11 // pred_fallthru
          _
        // Predicated region
        $region29: #{tpu_custom_call.1} parent=11 // pred_check
          %p221 = pneg %p147
        $region30: #{tpu_custom_call.1} parent=11 // pred_check_branch
          %223 = sbr.rel (%p221) target = $region32
        $region31: #{tpu_custom_call.1} parent=11 // pred_region
          _
        $region32: #{tpu_custom_call.1} parent=11 // pred_fallthru
          _
        // Predicated region
        $region33: #{tpu_custom_call.1} parent=11 // pred_check
          %p224 = pneg %p168
        $region34: #{tpu_custom_call.1} parent=11 // pred_check_branch
          %226 = sbr.rel (%p224) target = $region36
        $region35: #{tpu_custom_call.1} parent=11 // pred_region
          _
        $region36: #{tpu_custom_call.1} parent=11 // pred_fallthru
          _
      $region12: #{tpu_custom_call.1} parent=5 // pred_fallthru
        _
      %p227 = scmp.lt.s32.totalorder %s16, 2
      // Predicated region
      $region37: #{tpu_custom_call.1} parent=5 // pred_check
        %p228 = pneg %p227
      $region38: #{tpu_custom_call.1} parent=5 // pred_check_branch
        %230 = sbr.rel (%p228) target = $region40
      $region39: #{tpu_custom_call.1} parent=5 // pred_region
        // Predicated region
        $region41: #{tpu_custom_call.1} parent=39 // pred_check
          %p231 = pneg %p36
        $region42: #{tpu_custom_call.1} parent=39 // pred_check_branch
          %233 = sbr.rel (%p231) target = $region44
        $region43: #{tpu_custom_call.1} parent=39 // pred_region
          %p234 = scmp.lt.s32.totalorder %s16, 1
          %s235 = scalar_select %p234, %s16, 1
          %s236 = smul.addr %s235, 2
          %s237 = smul.addr %s236, 4
          %s238 = scalar_lea.vmem %s0, %s237
        $region44: #{tpu_custom_call.1} parent=39 // pred_fallthru
          _
      $region40: #{tpu_custom_call.1} parent=5 // pred_fallthru
        _
      %p239 = scmp.le.s32.totalorder 1, %s16
      %p240 = scmp.lt.s32.totalorder %s16, 3
      %p241 = pnand %p239, %p240
      %p242 = pneg %p241
      // Predicated region
      $region45: #{tpu_custom_call.1} parent=5 // pred_check
        _
      $region46: #{tpu_custom_call.1} parent=5 // pred_check_branch
        %244 = sbr.rel (%p241) target = $region48
      $region47: #{tpu_custom_call.1} parent=5 // pred_region
        %s245 = ssub.s32 %s16, 1
        %p246 = scmp.lt.s32.totalorder %s21, 1
        %s247 = scalar_select %p246, %s21, 1
        %s248 = smul.addr %s247, 2
        %s249 = smul.addr %s248, 4
        %s250 = scalar_lea.vmem %s0, %s249
        %p251 = pneg %p42
        %p252 = pneg %p39
        %p253 = pneg %p63
        %p254 = pneg %p60
        %p255 = pneg %p84
        %p256 = pneg %p81
        %p257 = pneg %p105
        %p258 = pneg %p102
        %p259 = pneg %p126
        %p260 = pneg %p123
        %p261 = pneg %p147
        %p262 = pneg %p144
        %p263 = pneg %p168
        %p264 = pneg %p165
        %p265 = pneg %p194
        %p266 = pneg %p191
        %s267 = sand.u32 %s181, 1
        %s268 = scalar_lea.sflag [#allocation3], %s267
        %s269 = sand.u32 %s181, 1
        %s270 = smul.addr %s269, 8
        %s271 = scalar_lea.vmem [#allocation2], %s270
        %p272 = scmp.lt.s32.totalorder %s21, 1
        %s273 = scalar_select %p272, %s21, 1
        %s274 = smul.addr %s273, 2
        %s275 = smul.addr %s274, 4
        %s276 = scalar_lea.vmem %s0, %s275
        %v277 = vld [vmem:[%s276] sm:$0xff]
        %v278 = vld [vmem:[%s1] sm:$0xff]
        %v279 = vld [vmem:[%s1 + $0x8] sm:$0xff]
        %v280 = vld [vmem:[%s1 + $0x10] sm:$0xff]
        %v281 = vld [vmem:[%s1 + $0x18] sm:$0xff]
        %v282 = vld [vmem:[%s1 + $0x20] sm:$0xff]
        %v283 = vld [vmem:[%s1 + $0x28] sm:$0xff]
        %v284 = vld [vmem:[%s1 + $0x30] sm:$0xff]
        %v285 = vld [vmem:[%s1 + $0x38] sm:$0xff]
        %v286 = vld [vmem:[%s1 + $0x40] sm:$0xff]
        %v287 = vld [vmem:[%s1 + $0x48] sm:$0xff]
        %v288 = vld [vmem:[%s1 + $0x50] sm:$0xff]
        %v289 = vld [vmem:[%s1 + $0x58] sm:$0xff]
        %v290 = vld [vmem:[%s1 + $0x60] sm:$0xff]
        %v291 = vld [vmem:[%s1 + $0x68] sm:$0xff]
        %v292 = vld [vmem:[%s1 + $0x70] sm:$0xff]
        %v293 = vld [vmem:[%s1 + $0x78] sm:$0xff]
        %v294 = vld [vmem:[%s1 + $0x80] sm:$0xff]
        %v295 = vld [vmem:[%s1 + $0x88] sm:$0xff]
        %v296 = vld [vmem:[%s1 + $0x90] sm:$0xff]
        %v297 = vld [vmem:[%s1 + $0x98] sm:$0xff]
        %v298 = vld [vmem:[%s1 + $0xa0] sm:$0xff]
        %v299 = vld [vmem:[%s1 + $0xa8] sm:$0xff]
        %v300 = vld [vmem:[%s1 + $0xb0] sm:$0xff]
        %v301 = vld [vmem:[%s1 + $0xb8] sm:$0xff]
        %v302 = vld [vmem:[%s1 + $0xc0] sm:$0xff]
        %v303 = vld [vmem:[%s1 + $0xc8] sm:$0xff]
        %v304 = vld [vmem:[%s1 + $0xd0] sm:$0xff]
        %v305 = vld [vmem:[%s1 + $0xd8] sm:$0xff]
        %v306 = vld [vmem:[%s1 + $0xe0] sm:$0xff]
        %v307 = vld [vmem:[%s1 + $0xe8] sm:$0xff]
        %v308 = vld [vmem:[%s1 + $0xf0] sm:$0xff]
        %v309 = vld [vmem:[%s1 + $0xf8] sm:$0xff]
        %v310 = vld [vmem:[%s1 + $0x100] sm:$0xff]
        %v311 = vld [vmem:[%s1 + $0x108] sm:$0xff]
        %v312 = vld [vmem:[%s1 + $0x110] sm:$0xff]
        %v313 = vld [vmem:[%s1 + $0x118] sm:$0xff]
        %v314 = vld [vmem:[%s1 + $0x120] sm:$0xff]
        %v315 = vld [vmem:[%s1 + $0x128] sm:$0xff]
        %v316 = vld [vmem:[%s1 + $0x130] sm:$0xff]
        %v317 = vld [vmem:[%s1 + $0x138] sm:$0xff]
        %v318 = vld [vmem:[%s1 + $0x140] sm:$0xff]
        %v319 = vld [vmem:[%s1 + $0x148] sm:$0xff]
        %v320 = vld [vmem:[%s1 + $0x150] sm:$0xff]
        %v321 = vld [vmem:[%s1 + $0x158] sm:$0xff]
        %v322 = vld [vmem:[%s1 + $0x160] sm:$0xff]
        %v323 = vld [vmem:[%s1 + $0x168] sm:$0xff]
        %v324 = vld [vmem:[%s1 + $0x170] sm:$0xff]
        %v325 = vld [vmem:[%s1 + $0x178] sm:$0xff]
        %327 = vst [vmem:[#allocation1] ss:$2 sm:$0xff] %v277
        %v328 = vld.sshfl [vmem:[#allocation1] sm:$0xff pattern:$0x75316420]
        %v329 = vld.sshfl [vmem:[#allocation1 + $0x8] sm:$0xff pattern:$0x75316420]
        %vm330 = vcmask 31744
        %v332 = vsel %vm330, %v278, 0
        %v335 = vsel %vm330, %v279, 0
        %v338 = vsel %vm330, %v280, 0
        %v341 = vsel %vm330, %v281, 0
        %v344 = vsel %vm330, %v282, 0
        %v347 = vsel %vm330, %v283, 0
        %v350 = vsel %vm330, %v284, 0
        %v353 = vsel %vm330, %v285, 0
        %v356 = vsel %vm330, %v286, 0
        %v359 = vsel %vm330, %v287, 0
        %v362 = vsel %vm330, %v288, 0
        %v365 = vsel %vm330, %v289, 0
        %v368 = vsel %vm330, %v290, 0
        %v371 = vsel %vm330, %v291, 0
        %v374 = vsel %vm330, %v292, 0
        %v377 = vsel %vm330, %v293, 0
        %v380 = vsel %vm330, %v294, 0
        %v383 = vsel %vm330, %v295, 0
        %v386 = vsel %vm330, %v296, 0
        %v389 = vsel %vm330, %v297, 0
        %v392 = vsel %vm330, %v298, 0
        %v395 = vsel %vm330, %v299, 0
        %v398 = vsel %vm330, %v300, 0
        %v401 = vsel %vm330, %v301, 0
        %v404 = vsel %vm330, %v302, 0
        %v407 = vsel %vm330, %v303, 0
        %v410 = vsel %vm330, %v304, 0
        %v413 = vsel %vm330, %v305, 0
        %v416 = vsel %vm330, %v306, 0
        %v419 = vsel %vm330, %v307, 0
        %v422 = vsel %vm330, %v308, 0
        %v425 = vsel %vm330, %v309, 0
        %v428 = vsel %vm330, %v310, 0
        %v431 = vsel %vm330, %v311, 0
        %v434 = vsel %vm330, %v312, 0
        %v437 = vsel %vm330, %v313, 0
        %v440 = vsel %vm330, %v314, 0
        %v443 = vsel %vm330, %v315, 0
        %v446 = vsel %vm330, %v316, 0
        %v449 = vsel %vm330, %v317, 0
        %v452 = vsel %vm330, %v318, 0
        %v455 = vsel %vm330, %v319, 0
        %v458 = vsel %vm330, %v320, 0
        %v461 = vsel %vm330, %v321, 0
        %v464 = vsel %vm330, %v322, 0
        %v467 = vsel %vm330, %v323, 0
        %v470 = vsel %vm330, %v324, 0
        %v473 = vsel %vm330, %v325, 0
        %vm475 = vcmask 1043456
        %v476 = vsel %vm475, %v328, 0
        %v478 = vsel %vm475, %v329, 0
        %480 = vmatpush.msra.mxu0 0.0
        %481 = vmatpush.msra.mxu0 0.0
        %482 = vmatpush.msra.mxu0 0.0
        %483 = vmatpush.msra.mxu0 0.0
        %484 = vmatpush.msra.mxu0 0.0
        %485 = vmatpush.msra.mxu0 0.0
        %486 = vmatpush.msra.mxu0 0.0
        %487 = vmatpush.msra.mxu0 0.0
        %488 = vmatpush.msra.mxu0 0.0
        %489 = vmatpush.msra.mxu0 0.0
        %490 = vmatpush.msra.mxu0 0.0
        %491 = vmatpush.msra.mxu0 0.0
        %492 = vmatpush.msra.mxu0 0.0
        %493 = vmatpush.msra.mxu0 0.0
        %494 = vmatpush.msra.mxu0 0.0
        %495 = vmatpush.msra.mxu0 %v476
        %496 = vmatmul.f32.gmra.mxu0 %v332
        %v497 = vpop.f32.mrf.mxu0
        %v498 = vadd.f32 0.0, %v497
        %499 = vmatmul.f32.gmra.mxu0 %v335
        %v500 = vpop.f32.mrf.mxu0
        %v501 = vadd.f32 0.0, %v500
        %502 = vmatmul.f32.gmra.mxu0 %v338
        %v503 = vpop.f32.mrf.mxu0
        %v504 = vadd.f32 0.0, %v503
        %505 = vmatmul.f32.gmra.mxu0 %v341
        %v506 = vpop.f32.mrf.mxu0
        %v507 = vadd.f32 0.0, %v506
        %508 = vmatmul.f32.gmra.mxu0 %v344
        %v509 = vpop.f32.mrf.mxu0
        %v510 = vadd.f32 0.0, %v509
        %511 = vmatmul.f32.gmra.mxu0 %v347
        %v512 = vpop.f32.mrf.mxu0
        %v513 = vadd.f32 0.0, %v512
        %514 = vmatmul.f32.gmra.mxu0 %v350
        %v515 = vpop.f32.mrf.mxu0
        %v516 = vadd.f32 0.0, %v515
        %517 = vmatmul.f32.gmra.mxu0 %v353
        %v518 = vpop.f32.mrf.mxu0
        %v519 = vadd.f32 0.0, %v518
        %520 = vmatmul.f32.gmra.mxu0 %v356
        %v521 = vpop.f32.mrf.mxu0
        %v522 = vadd.f32 0.0, %v521
        %523 = vmatmul.f32.gmra.mxu0 %v359
        %v524 = vpop.f32.mrf.mxu0
        %v525 = vadd.f32 0.0, %v524
        %526 = vmatmul.f32.gmra.mxu0 %v362
        %v527 = vpop.f32.mrf.mxu0
        %v528 = vadd.f32 0.0, %v527
        %529 = vmatmul.f32.gmra.mxu0 %v365
        %v530 = vpop.f32.mrf.mxu0
        %v531 = vadd.f32 0.0, %v530
        %532 = vmatmul.f32.gmra.mxu0 %v368
        %v533 = vpop.f32.mrf.mxu0
        %v534 = vadd.f32 0.0, %v533
        %535 = vmatmul.f32.gmra.mxu0 %v371
        %v536 = vpop.f32.mrf.mxu0
        %v537 = vadd.f32 0.0, %v536
        %538 = vmatmul.f32.gmra.mxu0 %v374
        %v539 = vpop.f32.mrf.mxu0
        %v540 = vadd.f32 0.0, %v539
        %541 = vmatmul.f32.gmra.mxu0 %v377
        %v542 = vpop.f32.mrf.mxu0
        %v543 = vadd.f32 0.0, %v542
        %544 = vmatmul.f32.gmra.mxu0 %v380
        %v545 = vpop.f32.mrf.mxu0
        %v546 = vadd.f32 0.0, %v545
        %547 = vmatmul.f32.gmra.mxu0 %v383
        %v548 = vpop.f32.mrf.mxu0
        %v549 = vadd.f32 0.0, %v548
        %550 = vmatmul.f32.gmra.mxu0 %v386
        %v551 = vpop.f32.mrf.mxu0
        %v552 = vadd.f32 0.0, %v551
        %553 = vmatmul.f32.gmra.mxu0 %v389
        %v554 = vpop.f32.mrf.mxu0
        %v555 = vadd.f32 0.0, %v554
        %556 = vmatmul.f32.gmra.mxu0 %v392
        %v557 = vpop.f32.mrf.mxu0
        %v558 = vadd.f32 0.0, %v557
        %559 = vmatmul.f32.gmra.mxu0 %v395
        %v560 = vpop.f32.mrf.mxu0
        %v561 = vadd.f32 0.0, %v560
        %562 = vmatmul.f32.gmra.mxu0 %v398
        %v563 = vpop.f32.mrf.mxu0
        %v564 = vadd.f32 0.0, %v563
        %565 = vmatmul.f32.gmra.mxu0 %v401
        %v566 = vpop.f32.mrf.mxu0
        %v567 = vadd.f32 0.0, %v566
        %568 = vmatmul.f32.gmra.mxu0 %v404
        %v569 = vpop.f32.mrf.mxu0
        %v570 = vadd.f32 0.0, %v569
        %571 = vmatmul.f32.gmra.mxu0 %v407
        %v572 = vpop.f32.mrf.mxu0
        %v573 = vadd.f32 0.0, %v572
        %574 = vmatmul.f32.gmra.mxu0 %v410
        %v575 = vpop.f32.mrf.mxu0
        %v576 = vadd.f32 0.0, %v575
        %577 = vmatmul.f32.gmra.mxu0 %v413
        %v578 = vpop.f32.mrf.mxu0
        %v579 = vadd.f32 0.0, %v578
        %580 = vmatmul.f32.gmra.mxu0 %v416
        %v581 = vpop.f32.mrf.mxu0
        %v582 = vadd.f32 0.0, %v581
        %583 = vmatmul.f32.gmra.mxu0 %v419
        %v584 = vpop.f32.mrf.mxu0
        %v585 = vadd.f32 0.0, %v584
        %586 = vmatmul.f32.gmra.mxu0 %v422
        %v587 = vpop.f32.mrf.mxu0
        %v588 = vadd.f32 0.0, %v587
        %589 = vmatmul.f32.gmra.mxu0 %v425
        %v590 = vpop.f32.mrf.mxu0
        %v591 = vadd.f32 0.0, %v590
        %592 = vmatmul.f32.gmra.mxu0 %v428
        %v593 = vpop.f32.mrf.mxu0
        %v594 = vadd.f32 0.0, %v593
        %595 = vmatmul.f32.gmra.mxu0 %v431
        %v596 = vpop.f32.mrf.mxu0
        %v597 = vadd.f32 0.0, %v596
        %598 = vmatmul.f32.gmra.mxu0 %v434
        %v599 = vpop.f32.mrf.mxu0
        %v600 = vadd.f32 0.0, %v599
        %601 = vmatmul.f32.gmra.mxu0 %v437
        %v602 = vpop.f32.mrf.mxu0
        %v603 = vadd.f32 0.0, %v602
        %604 = vmatmul.f32.gmra.mxu0 %v440
        %v605 = vpop.f32.mrf.mxu0
        %v606 = vadd.f32 0.0, %v605
        %607 = vmatmul.f32.gmra.mxu0 %v443
        %v608 = vpop.f32.mrf.mxu0
        %v609 = vadd.f32 0.0, %v608
        %610 = vmatmul.f32.gmra.mxu0 %v446
        %v611 = vpop.f32.mrf.mxu0
        %v612 = vadd.f32 0.0, %v611
        %613 = vmatmul.f32.gmra.mxu0 %v449
        %v614 = vpop.f32.mrf.mxu0
        %v615 = vadd.f32 0.0, %v614
        %616 = vmatmul.f32.gmra.mxu0 %v452
        %v617 = vpop.f32.mrf.mxu0
        %v618 = vadd.f32 0.0, %v617
        %619 = vmatmul.f32.gmra.mxu0 %v455
        %v620 = vpop.f32.mrf.mxu0
        %v621 = vadd.f32 0.0, %v620
        %622 = vmatmul.f32.gmra.mxu0 %v458
        %v623 = vpop.f32.mrf.mxu0
        %v624 = vadd.f32 0.0, %v623
        %625 = vmatmul.f32.gmra.mxu0 %v461
        %v626 = vpop.f32.mrf.mxu0
        %v627 = vadd.f32 0.0, %v626
        %628 = vmatmul.f32.gmra.mxu0 %v464
        %v629 = vpop.f32.mrf.mxu0
        %v630 = vadd.f32 0.0, %v629
        %631 = vmatmul.f32.gmra.mxu0 %v467
        %v632 = vpop.f32.mrf.mxu0
        %v633 = vadd.f32 0.0, %v632
        %634 = vmatmul.f32.gmra.mxu0 %v470
        %v635 = vpop.f32.mrf.mxu0
        %v636 = vadd.f32 0.0, %v635
        %637 = vmatmul.f32.gmra.mxu0 %v473
        %v638 = vpop.f32.mrf.mxu0
        %v639 = vadd.f32 0.0, %v638
        %640 = vdwg.mxu0
        %641 = vmatpush.msra.mxu0 0.0
        %642 = vmatpush.msra.mxu0 0.0
        %643 = vmatpush.msra.mxu0 0.0
        %644 = vmatpush.msra.mxu0 0.0
        %645 = vmatpush.msra.mxu0 0.0
        %646 = vmatpush.msra.mxu0 0.0
        %647 = vmatpush.msra.mxu0 0.0
        %648 = vmatpush.msra.mxu0 0.0
        %649 = vmatpush.msra.mxu0 0.0
        %650 = vmatpush.msra.mxu0 0.0
        %651 = vmatpush.msra.mxu0 0.0
        %652 = vmatpush.msra.mxu0 0.0
        %653 = vmatpush.msra.mxu0 0.0
        %654 = vmatpush.msra.mxu0 0.0
        %655 = vmatpush.msra.mxu0 0.0
        %656 = vmatpush.msra.mxu0 %v478
        %657 = vmatmul.f32.gmra.mxu0 %v332
        %v658 = vpop.f32.mrf.mxu0
        %v659 = vadd.f32 0.0, %v658
        %660 = vmatmul.f32.gmra.mxu0 %v335
        %v661 = vpop.f32.mrf.mxu0
        %v662 = vadd.f32 0.0, %v661
        %663 = vmatmul.f32.gmra.mxu0 %v338
        %v664 = vpop.f32.mrf.mxu0
        %v665 = vadd.f32 0.0, %v664
        %666 = vmatmul.f32.gmra.mxu0 %v341
        %v667 = vpop.f32.mrf.mxu0
        %v668 = vadd.f32 0.0, %v667
        %669 = vmatmul.f32.gmra.mxu0 %v344
        %v670 = vpop.f32.mrf.mxu0
        %v671 = vadd.f32 0.0, %v670
        %672 = vmatmul.f32.gmra.mxu0 %v347
        %v673 = vpop.f32.mrf.mxu0
        %v674 = vadd.f32 0.0, %v673
        %675 = vmatmul.f32.gmra.mxu0 %v350
        %v676 = vpop.f32.mrf.mxu0
        %v677 = vadd.f32 0.0, %v676
        %678 = vmatmul.f32.gmra.mxu0 %v353
        %v679 = vpop.f32.mrf.mxu0
        %v680 = vadd.f32 0.0, %v679
        %681 = vmatmul.f32.gmra.mxu0 %v356
        %v682 = vpop.f32.mrf.mxu0
        %v683 = vadd.f32 0.0, %v682
        %684 = vmatmul.f32.gmra.mxu0 %v359
        %v685 = vpop.f32.mrf.mxu0
        %v686 = vadd.f32 0.0, %v685
        %687 = vmatmul.f32.gmra.mxu0 %v362
        %v688 = vpop.f32.mrf.mxu0
        %v689 = vadd.f32 0.0, %v688
        %690 = vmatmul.f32.gmra.mxu0 %v365
        %v691 = vpop.f32.mrf.mxu0
        %v692 = vadd.f32 0.0, %v691
        %693 = vmatmul.f32.gmra.mxu0 %v368
        %v694 = vpop.f32.mrf.mxu0
        %v695 = vadd.f32 0.0, %v694
        %696 = vmatmul.f32.gmra.mxu0 %v371
        %v697 = vpop.f32.mrf.mxu0
        %v698 = vadd.f32 0.0, %v697
        %699 = vmatmul.f32.gmra.mxu0 %v374
        %v700 = vpop.f32.mrf.mxu0
        %v701 = vadd.f32 0.0, %v700
        %702 = vmatmul.f32.gmra.mxu0 %v377
        %v703 = vpop.f32.mrf.mxu0
        %v704 = vadd.f32 0.0, %v703
        %705 = vmatmul.f32.gmra.mxu0 %v380
        %v706 = vpop.f32.mrf.mxu0
        %v707 = vadd.f32 0.0, %v706
        %708 = vmatmul.f32.gmra.mxu0 %v383
        %v709 = vpop.f32.mrf.mxu0
        %v710 = vadd.f32 0.0, %v709
        %711 = vmatmul.f32.gmra.mxu0 %v386
        %v712 = vpop.f32.mrf.mxu0
        %v713 = vadd.f32 0.0, %v712
        %714 = vmatmul.f32.gmra.mxu0 %v389
        %v715 = vpop.f32.mrf.mxu0
        %v716 = vadd.f32 0.0, %v715
        %717 = vmatmul.f32.gmra.mxu0 %v392
        %v718 = vpop.f32.mrf.mxu0
        %v719 = vadd.f32 0.0, %v718
        %720 = vmatmul.f32.gmra.mxu0 %v395
        %v721 = vpop.f32.mrf.mxu0
        %v722 = vadd.f32 0.0, %v721
        %723 = vmatmul.f32.gmra.mxu0 %v398
        %v724 = vpop.f32.mrf.mxu0
        %v725 = vadd.f32 0.0, %v724
        %726 = vmatmul.f32.gmra.mxu0 %v401
        %v727 = vpop.f32.mrf.mxu0
        %v728 = vadd.f32 0.0, %v727
        %729 = vmatmul.f32.gmra.mxu0 %v404
        %v730 = vpop.f32.mrf.mxu0
        %v731 = vadd.f32 0.0, %v730
        %732 = vmatmul.f32.gmra.mxu0 %v407
        %v733 = vpop.f32.mrf.mxu0
        %v734 = vadd.f32 0.0, %v733
        %735 = vmatmul.f32.gmra.mxu0 %v410
        %v736 = vpop.f32.mrf.mxu0
        %v737 = vadd.f32 0.0, %v736
        %738 = vmatmul.f32.gmra.mxu0 %v413
        %v739 = vpop.f32.mrf.mxu0
        %v740 = vadd.f32 0.0, %v739
        %741 = vmatmul.f32.gmra.mxu0 %v416
        %v742 = vpop.f32.mrf.mxu0
        %v743 = vadd.f32 0.0, %v742
        %744 = vmatmul.f32.gmra.mxu0 %v419
        %v745 = vpop.f32.mrf.mxu0
        %v746 = vadd.f32 0.0, %v745
        %747 = vmatmul.f32.gmra.mxu0 %v422
        %v748 = vpop.f32.mrf.mxu0
        %v749 = vadd.f32 0.0, %v748
        %750 = vmatmul.f32.gmra.mxu0 %v425
        %v751 = vpop.f32.mrf.mxu0
        %v752 = vadd.f32 0.0, %v751
        %753 = vmatmul.f32.gmra.mxu0 %v428
        %v754 = vpop.f32.mrf.mxu0
        %v755 = vadd.f32 0.0, %v754
        %756 = vmatmul.f32.gmra.mxu0 %v431
        %v757 = vpop.f32.mrf.mxu0
        %v758 = vadd.f32 0.0, %v757
        %759 = vmatmul.f32.gmra.mxu0 %v434
        %v760 = vpop.f32.mrf.mxu0
        %v761 = vadd.f32 0.0, %v760
        %762 = vmatmul.f32.gmra.mxu0 %v437
        %v763 = vpop.f32.mrf.mxu0
        %v764 = vadd.f32 0.0, %v763
        %765 = vmatmul.f32.gmra.mxu0 %v440
        %v766 = vpop.f32.mrf.mxu0
        %v767 = vadd.f32 0.0, %v766
        %768 = vmatmul.f32.gmra.mxu0 %v443
        %v769 = vpop.f32.mrf.mxu0
        %v770 = vadd.f32 0.0, %v769
        %771 = vmatmul.f32.gmra.mxu0 %v446
        %v772 = vpop.f32.mrf.mxu0
        %v773 = vadd.f32 0.0, %v772
        %774 = vmatmul.f32.gmra.mxu0 %v449
        %v775 = vpop.f32.mrf.mxu0
        %v776 = vadd.f32 0.0, %v775
        %777 = vmatmul.f32.gmra.mxu0 %v452
        %v778 = vpop.f32.mrf.mxu0
        %v779 = vadd.f32 0.0, %v778
        %780 = vmatmul.f32.gmra.mxu0 %v455
        %v781 = vpop.f32.mrf.mxu0
        %v782 = vadd.f32 0.0, %v781
        %783 = vmatmul.f32.gmra.mxu0 %v458
        %v784 = vpop.f32.mrf.mxu0
        %v785 = vadd.f32 0.0, %v784
        %786 = vmatmul.f32.gmra.mxu0 %v461
        %v787 = vpop.f32.mrf.mxu0
        %v788 = vadd.f32 0.0, %v787
        %789 = vmatmul.f32.gmra.mxu0 %v464
        %v790 = vpop.f32.mrf.mxu0
        %v791 = vadd.f32 0.0, %v790
        %792 = vmatmul.f32.gmra.mxu0 %v467
        %v793 = vpop.f32.mrf.mxu0
        %v794 = vadd.f32 0.0, %v793
        %795 = vmatmul.f32.gmra.mxu0 %v470
        %v796 = vpop.f32.mrf.mxu0
        %v797 = vadd.f32 0.0, %v796
        %798 = vmatmul.f32.gmra.mxu0 %v473
        %v799 = vpop.f32.mrf.mxu0
        %v800 = vadd.f32 0.0, %v799
        %801 = vdwg.mxu0
        %v802 = vmax.f32 %v498, %v501
        %v803 = vmax.f32 %v802, %v504
        %v804 = vmax.f32 %v803, %v507
        %v805 = vrot.slane %v804, 4
        %v806 = vmax.f32 %v804, %v805
        %v807 = vrot.slane %v806, 2
        %v808 = vmax.f32 %v806, %v807
        %v809 = vrot.slane %v808, 1
        %v810 = vmax.f32 %v808, %v809
        %v811 = vmax.f32 %v659, %v662
        %v812 = vmax.f32 %v811, %v665
        %v813 = vmax.f32 %v812, %v668
        %v814 = vrot.slane %v813, 4
        %v815 = vmax.f32 %v813, %v814
        %v816 = vrot.slane %v815, 2
        %v817 = vmax.f32 %v815, %v816
        %v818 = vrot.slane %v817, 1
        %v819 = vmax.f32 %v817, %v818
        %v820 = vmax.f32 %v510, %v513
        %v821 = vmax.f32 %v820, %v516
        %v822 = vmax.f32 %v821, %v519
        %v823 = vrot.slane %v822, 4
        %v824 = vmax.f32 %v822, %v823
        %v825 = vrot.slane %v824, 2
        %v826 = vmax.f32 %v824, %v825
        %v827 = vrot.slane %v826, 1
        %v828 = vmax.f32 %v826, %v827
        %v829 = vmax.f32 %v671, %v674
        %v830 = vmax.f32 %v829, %v677
        %v831 = vmax.f32 %v830, %v680
        %v832 = vrot.slane %v831, 4
        %v833 = vmax.f32 %v831, %v832
        %v834 = vrot.slane %v833, 2
        %v835 = vmax.f32 %v833, %v834
        %v836 = vrot.slane %v835, 1
        %v837 = vmax.f32 %v835, %v836
        %v838 = vmax.f32 %v522, %v525
        %v839 = vmax.f32 %v838, %v528
        %v840 = vmax.f32 %v839, %v531
        %v841 = vrot.slane %v840, 4
        %v842 = vmax.f32 %v840, %v841
        %v843 = vrot.slane %v842, 2
        %v844 = vmax.f32 %v842, %v843
        %v845 = vrot.slane %v844, 1
        %v846 = vmax.f32 %v844, %v845
        %v847 = vmax.f32 %v683, %v686
        %v848 = vmax.f32 %v847, %v689
        %v849 = vmax.f32 %v848, %v692
        %v850 = vrot.slane %v849, 4
        %v851 = vmax.f32 %v849, %v850
        %v852 = vrot.slane %v851, 2
        %v853 = vmax.f32 %v851, %v852
        %v854 = vrot.slane %v853, 1
        %v855 = vmax.f32 %v853, %v854
        %v856 = vmax.f32 %v534, %v537
        %v857 = vmax.f32 %v856, %v540
        %v858 = vmax.f32 %v857, %v543
        %v859 = vrot.slane %v858, 4
        %v860 = vmax.f32 %v858, %v859
        %v861 = vrot.slane %v860, 2
        %v862 = vmax.f32 %v860, %v861
        %v863 = vrot.slane %v862, 1
        %v864 = vmax.f32 %v862, %v863
        %v865 = vmax.f32 %v695, %v698
        %v866 = vmax.f32 %v865, %v701
        %v867 = vmax.f32 %v866, %v704
        %v868 = vrot.slane %v867, 4
        %v869 = vmax.f32 %v867, %v868
        %v870 = vrot.slane %v869, 2
        %v871 = vmax.f32 %v869, %v870
        %v872 = vrot.slane %v871, 1
        %v873 = vmax.f32 %v871, %v872
        %v874 = vsub.f32 %v498, %v810
        %v875 = vsub.f32 %v659, %v819
        %v876 = vsub.f32 %v501, %v810
        %v877 = vsub.f32 %v662, %v819
        %v878 = vsub.f32 %v504, %v810
        %v879 = vsub.f32 %v665, %v819
        %v880 = vsub.f32 %v507, %v810
        %v881 = vsub.f32 %v668, %v819
        %v882 = vsub.f32 %v510, %v828
        %v883 = vsub.f32 %v671, %v837
        %v884 = vsub.f32 %v513, %v828
        %v885 = vsub.f32 %v674, %v837
        %v886 = vsub.f32 %v516, %v828
        %v887 = vsub.f32 %v677, %v837
        %v888 = vsub.f32 %v519, %v828
        %v889 = vsub.f32 %v680, %v837
        %v890 = vsub.f32 %v522, %v846
        %v891 = vsub.f32 %v683, %v855
        %v892 = vsub.f32 %v525, %v846
        %v893 = vsub.f32 %v686, %v855
        %v894 = vsub.f32 %v528, %v846
        %v895 = vsub.f32 %v689, %v855
        %v896 = vsub.f32 %v531, %v846
        %v897 = vsub.f32 %v692, %v855
        %v898 = vsub.f32 %v534, %v864
        %v899 = vsub.f32 %v695, %v873
        %v900 = vsub.f32 %v537, %v864
        %v901 = vsub.f32 %v698, %v873
        %v902 = vsub.f32 %v540, %v864
        %v903 = vsub.f32 %v701, %v873
        %v904 = vsub.f32 %v543, %v864
        %v905 = vsub.f32 %v704, %v873
        %v906 = vmul.f32 %v874, 1.442695
        %v907 = vpow.pop %v906
        %v908 = vmul.f32 %v875, 1.442695
        %v909 = vpow.pop %v908
        %v910 = vmul.f32 %v876, 1.442695
        %v911 = vpow.pop %v910
        %v912 = vmul.f32 %v877, 1.442695
        %v913 = vpow.pop %v912
        %v914 = vmul.f32 %v878, 1.442695
        %v915 = vpow.pop %v914
        %v916 = vmul.f32 %v879, 1.442695
        %v917 = vpow.pop %v916
        %v918 = vmul.f32 %v880, 1.442695
        %v919 = vpow.pop %v918
        %v920 = vmul.f32 %v881, 1.442695
        %v921 = vpow.pop %v920
        %v922 = vmul.f32 %v882, 1.442695
        %v923 = vpow.pop %v922
        %v924 = vmul.f32 %v883, 1.442695
        %v925 = vpow.pop %v924
        %v926 = vmul.f32 %v884, 1.442695
        %v927 = vpow.pop %v926
        %v928 = vmul.f32 %v885, 1.442695
        %v929 = vpow.pop %v928
        %v930 = vmul.f32 %v886, 1.442695
        %v931 = vpow.pop %v930
        %v932 = vmul.f32 %v887, 1.442695
        %v933 = vpow.pop %v932
        %v934 = vmul.f32 %v888, 1.442695
        %v935 = vpow.pop %v934
        %v936 = vmul.f32 %v889, 1.442695
        %v937 = vpow.pop %v936
        %v938 = vmul.f32 %v890, 1.442695
        %v939 = vpow.pop %v938
        %v940 = vmul.f32 %v891, 1.442695
        %v941 = vpow.pop %v940
        %v942 = vmul.f32 %v892, 1.442695
        %v943 = vpow.pop %v942
        %v944 = vmul.f32 %v893, 1.442695
        %v945 = vpow.pop %v944
        %v946 = vmul.f32 %v894, 1.442695
        %v947 = vpow.pop %v946
        %v948 = vmul.f32 %v895, 1.442695
        %v949 = vpow.pop %v948
        %v950 = vmul.f32 %v896, 1.442695
        %v951 = vpow.pop %v950
        %v952 = vmul.f32 %v897, 1.442695
        %v953 = vpow.pop %v952
        %v954 = vmul.f32 %v898, 1.442695
        %v955 = vpow.pop %v954
        %v956 = vmul.f32 %v899, 1.442695
        %v957 = vpow.pop %v956
        %v958 = vmul.f32 %v900, 1.442695
        %v959 = vpow.pop %v958
        %v960 = vmul.f32 %v901, 1.442695
        %v961 = vpow.pop %v960
        %v962 = vmul.f32 %v902, 1.442695
        %v963 = vpow.pop %v962
        %v964 = vmul.f32 %v903, 1.442695
        %v965 = vpow.pop %v964
        %v966 = vmul.f32 %v904, 1.442695
        %v967 = vpow.pop %v966
        %v968 = vmul.f32 %v905, 1.442695
        %v969 = vpow.pop %v968
        %v970 = vadd.f32 %v907, %v911
        %v971 = vadd.f32 %v970, %v915
        %v972 = vadd.f32 %v971, %v919
        %v973 = vrot.slane %v972, 4
        %v974 = vadd.f32 %v972, %v973
        %v975 = vrot.slane %v974, 2
        %v976 = vadd.f32 %v974, %v975
        %v977 = vrot.slane %v976, 1
        %v978 = vadd.f32 %v976, %v977
        %v979 = vadd.f32 %v909, %v913
        %v980 = vadd.f32 %v979, %v917
        %v981 = vadd.f32 %v980, %v921
        %v982 = vrot.slane %v981, 4
        %v983 = vadd.f32 %v981, %v982
        %v984 = vrot.slane %v983, 2
        %v985 = vadd.f32 %v983, %v984
        %v986 = vrot.slane %v985, 1
        %v987 = vadd.f32 %v985, %v986
        %v988 = vadd.f32 %v923, %v927
        %v989 = vadd.f32 %v988, %v931
        %v990 = vadd.f32 %v989, %v935
        %v991 = vrot.slane %v990, 4
        %v992 = vadd.f32 %v990, %v991
        %v993 = vrot.slane %v992, 2
        %v994 = vadd.f32 %v992, %v993
        %v995 = vrot.slane %v994, 1
        %v996 = vadd.f32 %v994, %v995
        %v997 = vadd.f32 %v925, %v929
        %v998 = vadd.f32 %v997, %v933
        %v999 = vadd.f32 %v998, %v937
        %v1000 = vrot.slane %v999, 4
        %v1001 = vadd.f32 %v999, %v1000
        %v1002 = vrot.slane %v1001, 2
        %v1003 = vadd.f32 %v1001, %v1002
        %v1004 = vrot.slane %v1003, 1
        %v1005 = vadd.f32 %v1003, %v1004
        %v1006 = vadd.f32 %v939, %v943
        %v1007 = vadd.f32 %v1006, %v947
        %v1008 = vadd.f32 %v1007, %v951
        %v1009 = vrot.slane %v1008, 4
        %v1010 = vadd.f32 %v1008, %v1009
        %v1011 = vrot.slane %v1010, 2
        %v1012 = vadd.f32 %v1010, %v1011
        %v1013 = vrot.slane %v1012, 1
        %v1014 = vadd.f32 %v1012, %v1013
        %v1015 = vadd.f32 %v941, %v945
        %v1016 = vadd.f32 %v1015, %v949
        %v1017 = vadd.f32 %v1016, %v953
        %v1018 = vrot.slane %v1017, 4
        %v1019 = vadd.f32 %v1017, %v1018
        %v1020 = vrot.slane %v1019, 2
        %v1021 = vadd.f32 %v1019, %v1020
        %v1022 = vrot.slane %v1021, 1
        %v1023 = vadd.f32 %v1021, %v1022
        %v1024 = vadd.f32 %v955, %v959
        %v1025 = vadd.f32 %v1024, %v963
        %v1026 = vadd.f32 %v1025, %v967
        %v1027 = vrot.slane %v1026, 4
        %v1028 = vadd.f32 %v1026, %v1027
        %v1029 = vrot.slane %v1028, 2
        %v1030 = vadd.f32 %v1028, %v1029
        %v1031 = vrot.slane %v1030, 1
        %v1032 = vadd.f32 %v1030, %v1031
        %v1033 = vadd.f32 %v957, %v961
        %v1034 = vadd.f32 %v1033, %v965
        %v1035 = vadd.f32 %v1034, %v969
        %v1036 = vrot.slane %v1035, 4
        %v1037 = vadd.f32 %v1035, %v1036
        %v1038 = vrot.slane %v1037, 2
        %v1039 = vadd.f32 %v1037, %v1038
        %v1040 = vrot.slane %v1039, 1
        %v1041 = vadd.f32 %v1039, %v1040
        %v1042 = vrcp.pop %v978
        %v1043 = vrcp.pop %v987
        %v1044 = vrcp.pop %v996
        %v1045 = vrcp.pop %v1005
        %v1046 = vrcp.pop %v1014
        %v1047 = vrcp.pop %v1023
        %v1048 = vrcp.pop %v1032
        %v1049 = vrcp.pop %v1041
        %v1050 = vmul.f32 %v978, %v1042
        %v1051 = vmul.f32 %v987, %v1043
        %v1052 = vmul.f32 %v996, %v1044
        %v1053 = vmul.f32 %v1005, %v1045
        %v1054 = vmul.f32 %v1014, %v1046
        %v1055 = vmul.f32 %v1023, %v1047
        %v1056 = vmul.f32 %v1032, %v1048
        %v1057 = vmul.f32 %v1041, %v1049
        %v1058 = vsub.f32 2.0, %v1050
        %v1059 = vsub.f32 2.0, %v1051
        %v1060 = vsub.f32 2.0, %v1052
        %v1061 = vsub.f32 2.0, %v1053
        %v1062 = vsub.f32 2.0, %v1054
        %v1063 = vsub.f32 2.0, %v1055
        %v1064 = vsub.f32 2.0, %v1056
        %v1065 = vsub.f32 2.0, %v1057
        %v1066 = vmul.f32 %v1042, %v1058
        %v1067 = vmul.f32 %v1043, %v1059
        %v1068 = vmul.f32 %v1044, %v1060
        %v1069 = vmul.f32 %v1045, %v1061
        %v1070 = vmul.f32 %v1046, %v1062
        %v1071 = vmul.f32 %v1047, %v1063
        %v1072 = vmul.f32 %v1048, %v1064
        %v1073 = vmul.f32 %v1049, %v1065
        %v1074 = vmul.f32 %v1066, 0.17677669
        %v1075 = vmul.f32 %v1067, 0.17677669
        %v1076 = vmul.f32 %v1068, 0.17677669
        %v1077 = vmul.f32 %v1069, 0.17677669
        %v1078 = vmul.f32 %v1070, 0.17677669
        %v1079 = vmul.f32 %v1071, 0.17677669
        %v1080 = vmul.f32 %v1072, 0.17677669
        %v1081 = vmul.f32 %v1073, 0.17677669
        %v1082 = vmul.f32 %v907, %v1074
        %v1083 = vmul.f32 %v909, %v1075
        %v1084 = vmul.f32 %v911, %v1074
        %v1085 = vmul.f32 %v913, %v1075
        %v1086 = vmul.f32 %v915, %v1074
        %v1087 = vmul.f32 %v917, %v1075
        %v1088 = vmul.f32 %v919, %v1074
        %v1089 = vmul.f32 %v921, %v1075
        %v1090 = vmul.f32 %v923, %v1076
        %v1091 = vmul.f32 %v925, %v1077
        %v1092 = vmul.f32 %v927, %v1076
        %v1093 = vmul.f32 %v929, %v1077
        %v1094 = vmul.f32 %v931, %v1076
        %v1095 = vmul.f32 %v933, %v1077
        %v1096 = vmul.f32 %v935, %v1076
        %v1097 = vmul.f32 %v937, %v1077
        %v1098 = vmul.f32 %v939, %v1078
        %v1099 = vmul.f32 %v941, %v1079
        %v1100 = vmul.f32 %v943, %v1078
        %v1101 = vmul.f32 %v945, %v1079
        %v1102 = vmul.f32 %v947, %v1078
        %v1103 = vmul.f32 %v949, %v1079
        %v1104 = vmul.f32 %v951, %v1078
        %v1105 = vmul.f32 %v953, %v1079
        %v1106 = vmul.f32 %v955, %v1080
        %v1107 = vmul.f32 %v957, %v1081
        %v1108 = vmul.f32 %v959, %v1080
        %v1109 = vmul.f32 %v961, %v1081
        %v1110 = vmul.f32 %v963, %v1080
        %v1111 = vmul.f32 %v965, %v1081
        %v1112 = vmul.f32 %v967, %v1080
        %v1113 = vmul.f32 %v969, %v1081
        %v1114 = vmax.f32 %v546, %v707
        %1115 = vmax.xlane.f32.xlu0 %v1114
        %v1116 = vpop.xlane.xlu0 %1115
        %v1117 = vmax.f32 %v549, %v710
        %1118 = vmax.xlane.f32.xlu0 %v1117
        %v1119 = vpop.xlane.xlu0 %1118
        %v1120 = vmax.f32 %v552, %v713
        %1121 = vmax.xlane.f32.xlu0 %v1120
        %v1122 = vpop.xlane.xlu0 %1121
        %v1123 = vmax.f32 %v555, %v716
        %1124 = vmax.xlane.f32.xlu0 %v1123
        %v1125 = vpop.xlane.xlu0 %1124
        %v1126 = vmax.f32 %v558, %v719
        %1127 = vmax.xlane.f32.xlu0 %v1126
        %v1128 = vpop.xlane.xlu0 %1127
        %v1129 = vmax.f32 %v561, %v722
        %1130 = vmax.xlane.f32.xlu0 %v1129
        %v1131 = vpop.xlane.xlu0 %1130
        %v1132 = vmax.f32 %v564, %v725
        %1133 = vmax.xlane.f32.xlu0 %v1132
        %v1134 = vpop.xlane.xlu0 %1133
        %v1135 = vmax.f32 %v567, %v728
        %1136 = vmax.xlane.f32.xlu0 %v1135
        %v1137 = vpop.xlane.xlu0 %1136
        %v1138 = vmax.f32 %v570, %v731
        %1139 = vmax.xlane.f32.xlu0 %v1138
        %v1140 = vpop.xlane.xlu0 %1139
        %v1141 = vmax.f32 %v573, %v734
        %1142 = vmax.xlane.f32.xlu0 %v1141
        %v1143 = vpop.xlane.xlu0 %1142
        %v1144 = vmax.f32 %v576, %v737
        %1145 = vmax.xlane.f32.xlu0 %v1144
        %v1146 = vpop.xlane.xlu0 %1145
        %v1147 = vmax.f32 %v579, %v740
        %1148 = vmax.xlane.f32.xlu0 %v1147
        %v1149 = vpop.xlane.xlu0 %1148
        %v1150 = vmax.f32 %v582, %v743
        %1151 = vmax.xlane.f32.xlu0 %v1150
        %v1152 = vpop.xlane.xlu0 %1151
        %v1153 = vmax.f32 %v585, %v746
        %1154 = vmax.xlane.f32.xlu0 %v1153
        %v1155 = vpop.xlane.xlu0 %1154
        %v1156 = vmax.f32 %v588, %v749
        %1157 = vmax.xlane.f32.xlu0 %v1156
        %v1158 = vpop.xlane.xlu0 %1157
        %v1159 = vmax.f32 %v591, %v752
        %1160 = vmax.xlane.f32.xlu0 %v1159
        %v1161 = vpop.xlane.xlu0 %1160
        %v1162 = vsub.f32 %v546, %v1116
        %v1163 = vsub.f32 %v707, %v1116
        %v1164 = vsub.f32 %v549, %v1119
        %v1165 = vsub.f32 %v710, %v1119
        %v1166 = vsub.f32 %v552, %v1122
        %v1167 = vsub.f32 %v713, %v1122
        %v1168 = vsub.f32 %v555, %v1125
        %v1169 = vsub.f32 %v716, %v1125
        %v1170 = vsub.f32 %v558, %v1128
        %v1171 = vsub.f32 %v719, %v1128
        %v1172 = vsub.f32 %v561, %v1131
        %v1173 = vsub.f32 %v722, %v1131
        %v1174 = vsub.f32 %v564, %v1134
        %v1175 = vsub.f32 %v725, %v1134
        %v1176 = vsub.f32 %v567, %v1137
        %v1177 = vsub.f32 %v728, %v1137
        %v1178 = vsub.f32 %v570, %v1140
        %v1179 = vsub.f32 %v731, %v1140
        %v1180 = vsub.f32 %v573, %v1143
        %v1181 = vsub.f32 %v734, %v1143
        %v1182 = vsub.f32 %v576, %v1146
        %v1183 = vsub.f32 %v737, %v1146
        %v1184 = vsub.f32 %v579, %v1149
        %v1185 = vsub.f32 %v740, %v1149
        %v1186 = vsub.f32 %v582, %v1152
        %v1187 = vsub.f32 %v743, %v1152
        %v1188 = vsub.f32 %v585, %v1155
        %v1189 = vsub.f32 %v746, %v1155
        %v1190 = vsub.f32 %v588, %v1158
        %v1191 = vsub.f32 %v749, %v1158
        %v1192 = vsub.f32 %v591, %v1161
        %v1193 = vsub.f32 %v752, %v1161
        %v1194 = vmul.f32 %v1162, 1.442695
        %v1195 = vpow.pop %v1194
        %v1196 = vmul.f32 %v1163, 1.442695
        %v1197 = vpow.pop %v1196
        %v1198 = vmul.f32 %v1164, 1.442695
        %v1199 = vpow.pop %v1198
        %v1200 = vmul.f32 %v1165, 1.442695
        %v1201 = vpow.pop %v1200
        %v1202 = vmul.f32 %v1166, 1.442695
        %v1203 = vpow.pop %v1202
        %v1204 = vmul.f32 %v1167, 1.442695
        %v1205 = vpow.pop %v1204
        %v1206 = vmul.f32 %v1168, 1.442695
        %v1207 = vpow.pop %v1206
        %v1208 = vmul.f32 %v1169, 1.442695
        %v1209 = vpow.pop %v1208
        %v1210 = vmul.f32 %v1170, 1.442695
        %v1211 = vpow.pop %v1210
        %v1212 = vmul.f32 %v1171, 1.442695
        %v1213 = vpow.pop %v1212
        %v1214 = vmul.f32 %v1172, 1.442695
        %v1215 = vpow.pop %v1214
        %v1216 = vmul.f32 %v1173, 1.442695
        %v1217 = vpow.pop %v1216
        %v1218 = vmul.f32 %v1174, 1.442695
        %v1219 = vpow.pop %v1218
        %v1220 = vmul.f32 %v1175, 1.442695
        %v1221 = vpow.pop %v1220
        %v1222 = vmul.f32 %v1176, 1.442695
        %v1223 = vpow.pop %v1222
        %v1224 = vmul.f32 %v1177, 1.442695
        %v1225 = vpow.pop %v1224
        %v1226 = vmul.f32 %v1178, 1.442695
        %v1227 = vpow.pop %v1226
        %v1228 = vmul.f32 %v1179, 1.442695
        %v1229 = vpow.pop %v1228
        %v1230 = vmul.f32 %v1180, 1.442695
        %v1231 = vpow.pop %v1230
        %v1232 = vmul.f32 %v1181, 1.442695
        %v1233 = vpow.pop %v1232
        %v1234 = vmul.f32 %v1182, 1.442695
        %v1235 = vpow.pop %v1234
        %v1236 = vmul.f32 %v1183, 1.442695
        %v1237 = vpow.pop %v1236
        %v1238 = vmul.f32 %v1184, 1.442695
        %v1239 = vpow.pop %v1238
        %v1240 = vmul.f32 %v1185, 1.442695
        %v1241 = vpow.pop %v1240
        %v1242 = vmul.f32 %v1186, 1.442695
        %v1243 = vpow.pop %v1242
        %v1244 = vmul.f32 %v1187, 1.442695
        %v1245 = vpow.pop %v1244
        %v1246 = vmul.f32 %v1188, 1.442695
        %v1247 = vpow.pop %v1246
        %v1248 = vmul.f32 %v1189, 1.442695
        %v1249 = vpow.pop %v1248
        %v1250 = vmul.f32 %v1190, 1.442695
        %v1251 = vpow.pop %v1250
        %v1252 = vmul.f32 %v1191, 1.442695
        %v1253 = vpow.pop %v1252
        %v1254 = vmul.f32 %v1192, 1.442695
        %v1255 = vpow.pop %v1254
        %v1256 = vmul.f32 %v1193, 1.442695
        %v1257 = vpow.pop %v1256
        %v1258 = vadd.f32 %v1195, %v1197
        %1259 = vadd.xlane.f32.xlu0 %v1258
        %v1260 = vpop.xlane.xlu0 %1259
        %v1261 = vadd.f32 %v1199, %v1201
        %1262 = vadd.xlane.f32.xlu0 %v1261
        %v1263 = vpop.xlane.xlu0 %1262
        %v1264 = vadd.f32 %v1203, %v1205
        %1265 = vadd.xlane.f32.xlu0 %v1264
        %v1266 = vpop.xlane.xlu0 %1265
        %v1267 = vadd.f32 %v1207, %v1209
        %1268 = vadd.xlane.f32.xlu0 %v1267
        %v1269 = vpop.xlane.xlu0 %1268
        %v1270 = vadd.f32 %v1211, %v1213
        %1271 = vadd.xlane.f32.xlu0 %v1270
        %v1272 = vpop.xlane.xlu0 %1271
        %v1273 = vadd.f32 %v1215, %v1217
        %1274 = vadd.xlane.f32.xlu0 %v1273
        %v1275 = vpop.xlane.xlu0 %1274
        %v1276 = vadd.f32 %v1219, %v1221
        %1277 = vadd.xlane.f32.xlu0 %v1276
        %v1278 = vpop.xlane.xlu0 %1277
        %v1279 = vadd.f32 %v1223, %v1225
        %1280 = vadd.xlane.f32.xlu0 %v1279
        %v1281 = vpop.xlane.xlu0 %1280
        %v1282 = vadd.f32 %v1227, %v1229
        %1283 = vadd.xlane.f32.xlu0 %v1282
        %v1284 = vpop.xlane.xlu0 %1283
        %v1285 = vadd.f32 %v1231, %v1233
        %1286 = vadd.xlane.f32.xlu0 %v1285
        %v1287 = vpop.xlane.xlu0 %1286
        %v1288 = vadd.f32 %v1235, %v1237
        %1289 = vadd.xlane.f32.xlu0 %v1288
        %v1290 = vpop.xlane.xlu0 %1289
        %v1291 = vadd.f32 %v1239, %v1241
        %1292 = vadd.xlane.f32.xlu0 %v1291
        %v1293 = vpop.xlane.xlu0 %1292
        %v1294 = vadd.f32 %v1243, %v1245
        %1295 = vadd.xlane.f32.xlu0 %v1294
        %v1296 = vpop.xlane.xlu0 %1295
        %v1297 = vadd.f32 %v1247, %v1249
        %1298 = vadd.xlane.f32.xlu0 %v1297
        %v1299 = vpop.xlane.xlu0 %1298
        %v1300 = vadd.f32 %v1251, %v1253
        %1301 = vadd.xlane.f32.xlu0 %v1300
        %v1302 = vpop.xlane.xlu0 %1301
        %v1303 = vadd.f32 %v1255, %v1257
        %1304 = vadd.xlane.f32.xlu0 %v1303
        %v1305 = vpop.xlane.xlu0 %1304
        %v1306 = vrcp.pop %v1260
        %v1307 = vrcp.pop %v1263
        %v1308 = vrcp.pop %v1266
        %v1309 = vrcp.pop %v1269
        %v1310 = vrcp.pop %v1272
        %v1311 = vrcp.pop %v1275
        %v1312 = vrcp.pop %v1278
        %v1313 = vrcp.pop %v1281
        %v1314 = vrcp.pop %v1284
        %v1315 = vrcp.pop %v1287
        %v1316 = vrcp.pop %v1290
        %v1317 = vrcp.pop %v1293
        %v1318 = vrcp.pop %v1296
        %v1319 = vrcp.pop %v1299
        %v1320 = vrcp.pop %v1302
        %v1321 = vrcp.pop %v1305
        %v1322 = vmul.f32 %v1260, %v1306
        %v1323 = vmul.f32 %v1263, %v1307
        %v1324 = vmul.f32 %v1266, %v1308
        %v1325 = vmul.f32 %v1269, %v1309
        %v1326 = vmul.f32 %v1272, %v1310
        %v1327 = vmul.f32 %v1275, %v1311
        %v1328 = vmul.f32 %v1278, %v1312
        %v1329 = vmul.f32 %v1281, %v1313
        %v1330 = vmul.f32 %v1284, %v1314
        %v1331 = vmul.f32 %v1287, %v1315
        %v1332 = vmul.f32 %v1290, %v1316
        %v1333 = vmul.f32 %v1293, %v1317
        %v1334 = vmul.f32 %v1296, %v1318
        %v1335 = vmul.f32 %v1299, %v1319
        %v1336 = vmul.f32 %v1302, %v1320
        %v1337 = vmul.f32 %v1305, %v1321
        %v1338 = vsub.f32 2.0, %v1322
        %v1339 = vsub.f32 2.0, %v1323
        %v1340 = vsub.f32 2.0, %v1324
        %v1341 = vsub.f32 2.0, %v1325
        %v1342 = vsub.f32 2.0, %v1326
        %v1343 = vsub.f32 2.0, %v1327
        %v1344 = vsub.f32 2.0, %v1328
        %v1345 = vsub.f32 2.0, %v1329
        %v1346 = vsub.f32 2.0, %v1330
        %v1347 = vsub.f32 2.0, %v1331
        %v1348 = vsub.f32 2.0, %v1332
        %v1349 = vsub.f32 2.0, %v1333
        %v1350 = vsub.f32 2.0, %v1334
        %v1351 = vsub.f32 2.0, %v1335
        %v1352 = vsub.f32 2.0, %v1336
        %v1353 = vsub.f32 2.0, %v1337
        %v1354 = vmul.f32 %v1306, %v1338
        %v1355 = vmul.f32 %v1307, %v1339
        %v1356 = vmul.f32 %v1308, %v1340
        %v1357 = vmul.f32 %v1309, %v1341
        %v1358 = vmul.f32 %v1310, %v1342
        %v1359 = vmul.f32 %v1311, %v1343
        %v1360 = vmul.f32 %v1312, %v1344
        %v1361 = vmul.f32 %v1313, %v1345
        %v1362 = vmul.f32 %v1314, %v1346
        %v1363 = vmul.f32 %v1315, %v1347
        %v1364 = vmul.f32 %v1316, %v1348
        %v1365 = vmul.f32 %v1317, %v1349
        %v1366 = vmul.f32 %v1318, %v1350
        %v1367 = vmul.f32 %v1319, %v1351
        %v1368 = vmul.f32 %v1320, %v1352
        %v1369 = vmul.f32 %v1321, %v1353
        %v1370 = vmul.f32 %v1195, %v1354
        %v1371 = vmul.f32 %v1197, %v1354
        %v1372 = vmul.f32 %v1199, %v1355
        %v1373 = vmul.f32 %v1201, %v1355
        %v1374 = vmul.f32 %v1203, %v1356
        %v1375 = vmul.f32 %v1205, %v1356
        %v1376 = vmul.f32 %v1207, %v1357
        %v1377 = vmul.f32 %v1209, %v1357
        %v1378 = vmul.f32 %v1211, %v1358
        %v1379 = vmul.f32 %v1213, %v1358
        %v1380 = vmul.f32 %v1215, %v1359
        %v1381 = vmul.f32 %v1217, %v1359
        %v1382 = vmul.f32 %v1219, %v1360
        %v1383 = vmul.f32 %v1221, %v1360
        %v1384 = vmul.f32 %v1223, %v1361
        %v1385 = vmul.f32 %v1225, %v1361
        %v1386 = vmul.f32 %v1227, %v1362
        %v1387 = vmul.f32 %v1229, %v1362
        %v1388 = vmul.f32 %v1231, %v1363
        %v1389 = vmul.f32 %v1233, %v1363
        %v1390 = vmul.f32 %v1235, %v1364
        %v1391 = vmul.f32 %v1237, %v1364
        %v1392 = vmul.f32 %v1239, %v1365
        %v1393 = vmul.f32 %v1241, %v1365
        %v1394 = vmul.f32 %v1243, %v1366
        %v1395 = vmul.f32 %v1245, %v1366
        %v1396 = vmul.f32 %v1247, %v1367
        %v1397 = vmul.f32 %v1249, %v1367
        %v1398 = vmul.f32 %v1251, %v1368
        %v1399 = vmul.f32 %v1253, %v1368
        %v1400 = vmul.f32 %v1255, %v1369
        %v1401 = vmul.f32 %v1257, %v1369
        %1402 = vmatpush.xpose.msra.mxu0 %v1400
        %1403 = vmatpush.xpose.msra.mxu0 %v1398
        %1404 = vmatpush.xpose.msra.mxu0 %v1396
        %1405 = vmatpush.xpose.msra.mxu0 %v1394
        %1406 = vmatpush.xpose.msra.mxu0 %v1392
        %1407 = vmatpush.xpose.msra.mxu0 %v1390
        %1408 = vmatpush.xpose.msra.mxu0 %v1388
        %1409 = vmatpush.xpose.msra.mxu0 %v1386
        %1410 = vmatpush.xpose.msra.mxu0 %v1384
        %1411 = vmatpush.xpose.msra.mxu0 %v1382
        %1412 = vmatpush.xpose.msra.mxu0 %v1380
        %1413 = vmatpush.xpose.msra.mxu0 %v1378
        %1414 = vmatpush.xpose.msra.mxu0 %v1376
        %1415 = vmatpush.xpose.msra.mxu0 %v1374
        %1416 = vmatpush.xpose.msra.mxu0 %v1372
        %1417 = vmatpush.xpose.msra.mxu0 %v1370
        %1418 = vmatmul.f32.gmra.mxu0 %v594
        %v1419 = vpop.f32.mrf.mxu0
        %v1420 = vadd.f32 0.0, %v1419
        %1421 = vmatmul.f32.gmra.mxu0 %v597
        %v1422 = vpop.f32.mrf.mxu0
        %v1423 = vadd.f32 0.0, %v1422
        %1424 = vmatmul.f32.gmra.mxu0 %v600
        %v1425 = vpop.f32.mrf.mxu0
        %v1426 = vadd.f32 0.0, %v1425
        %1427 = vmatmul.f32.gmra.mxu0 %v603
        %v1428 = vpop.f32.mrf.mxu0
        %v1429 = vadd.f32 0.0, %v1428
        %1430 = vmatmul.f32.gmra.mxu0 %v606
        %v1431 = vpop.f32.mrf.mxu0
        %v1432 = vadd.f32 0.0, %v1431
        %1433 = vmatmul.f32.gmra.mxu0 %v609
        %v1434 = vpop.f32.mrf.mxu0
        %v1435 = vadd.f32 0.0, %v1434
        %1436 = vmatmul.f32.gmra.mxu0 %v612
        %v1437 = vpop.f32.mrf.mxu0
        %v1438 = vadd.f32 0.0, %v1437
        %1439 = vmatmul.f32.gmra.mxu0 %v615
        %v1440 = vpop.f32.mrf.mxu0
        %v1441 = vadd.f32 0.0, %v1440
        %1442 = vmatmul.f32.gmra.mxu0 %v618
        %v1443 = vpop.f32.mrf.mxu0
        %v1444 = vadd.f32 0.0, %v1443
        %1445 = vmatmul.f32.gmra.mxu0 %v621
        %v1446 = vpop.f32.mrf.mxu0
        %v1447 = vadd.f32 0.0, %v1446
        %1448 = vmatmul.f32.gmra.mxu0 %v624
        %v1449 = vpop.f32.mrf.mxu0
        %v1450 = vadd.f32 0.0, %v1449
        %1451 = vmatmul.f32.gmra.mxu0 %v627
        %v1452 = vpop.f32.mrf.mxu0
        %v1453 = vadd.f32 0.0, %v1452
        %1454 = vmatmul.f32.gmra.mxu0 %v630
        %v1455 = vpop.f32.mrf.mxu0
        %v1456 = vadd.f32 0.0, %v1455
        %1457 = vmatmul.f32.gmra.mxu0 %v633
        %v1458 = vpop.f32.mrf.mxu0
        %v1459 = vadd.f32 0.0, %v1458
        %1460 = vmatmul.f32.gmra.mxu0 %v636
        %v1461 = vpop.f32.mrf.mxu0
        %v1462 = vadd.f32 0.0, %v1461
        %1463 = vmatmul.f32.gmra.mxu0 %v639
        %v1464 = vpop.f32.mrf.mxu0
        %v1465 = vadd.f32 0.0, %v1464
        %1466 = vdwg.mxu0
        %1467 = vmatpush.xpose.msra.mxu0 %v1401
        %1468 = vmatpush.xpose.msra.mxu0 %v1399
        %1469 = vmatpush.xpose.msra.mxu0 %v1397
        %1470 = vmatpush.xpose.msra.mxu0 %v1395
        %1471 = vmatpush.xpose.msra.mxu0 %v1393
        %1472 = vmatpush.xpose.msra.mxu0 %v1391
        %1473 = vmatpush.xpose.msra.mxu0 %v1389
        %1474 = vmatpush.xpose.msra.mxu0 %v1387
        %1475 = vmatpush.xpose.msra.mxu0 %v1385
        %1476 = vmatpush.xpose.msra.mxu0 %v1383
        %1477 = vmatpush.xpose.msra.mxu0 %v1381
        %1478 = vmatpush.xpose.msra.mxu0 %v1379
        %1479 = vmatpush.xpose.msra.mxu0 %v1377
        %1480 = vmatpush.xpose.msra.mxu0 %v1375
        %1481 = vmatpush.xpose.msra.mxu0 %v1373
        %1482 = vmatpush.xpose.msra.mxu0 %v1371
        %1483 = vmatmul.f32.gmra.mxu0 %v755
        %v1484 = vpop.f32.mrf.mxu0
        %v1485 = vadd.f32 %v1420, %v1484
        %1486 = vmatmul.f32.gmra.mxu0 %v758
        %v1487 = vpop.f32.mrf.mxu0
        %v1488 = vadd.f32 %v1423, %v1487
        %1489 = vmatmul.f32.gmra.mxu0 %v761
        %v1490 = vpop.f32.mrf.mxu0
        %v1491 = vadd.f32 %v1426, %v1490
        %1492 = vmatmul.f32.gmra.mxu0 %v764
        %v1493 = vpop.f32.mrf.mxu0
        %v1494 = vadd.f32 %v1429, %v1493
        %1495 = vmatmul.f32.gmra.mxu0 %v767
        %v1496 = vpop.f32.mrf.mxu0
        %v1497 = vadd.f32 %v1432, %v1496
        %1498 = vmatmul.f32.gmra.mxu0 %v770
        %v1499 = vpop.f32.mrf.mxu0
        %v1500 = vadd.f32 %v1435, %v1499
        %1501 = vmatmul.f32.gmra.mxu0 %v773
        %v1502 = vpop.f32.mrf.mxu0
        %v1503 = vadd.f32 %v1438, %v1502
        %1504 = vmatmul.f32.gmra.mxu0 %v776
        %v1505 = vpop.f32.mrf.mxu0
        %v1506 = vadd.f32 %v1441, %v1505
        %1507 = vmatmul.f32.gmra.mxu0 %v779
        %v1508 = vpop.f32.mrf.mxu0
        %v1509 = vadd.f32 %v1444, %v1508
        %1510 = vmatmul.f32.gmra.mxu0 %v782
        %v1511 = vpop.f32.mrf.mxu0
        %v1512 = vadd.f32 %v1447, %v1511
        %1513 = vmatmul.f32.gmra.mxu0 %v785
        %v1514 = vpop.f32.mrf.mxu0
        %v1515 = vadd.f32 %v1450, %v1514
        %1516 = vmatmul.f32.gmra.mxu0 %v788
        %v1517 = vpop.f32.mrf.mxu0
        %v1518 = vadd.f32 %v1453, %v1517
        %1519 = vmatmul.f32.gmra.mxu0 %v791
        %v1520 = vpop.f32.mrf.mxu0
        %v1521 = vadd.f32 %v1456, %v1520
        %1522 = vmatmul.f32.gmra.mxu0 %v794
        %v1523 = vpop.f32.mrf.mxu0
        %v1524 = vadd.f32 %v1459, %v1523
        %1525 = vmatmul.f32.gmra.mxu0 %v797
        %v1526 = vpop.f32.mrf.mxu0
        %v1527 = vadd.f32 %v1462, %v1526
        %1528 = vmatmul.f32.gmra.mxu0 %v800
        %v1529 = vpop.f32.mrf.mxu0
        %v1530 = vadd.f32 %v1465, %v1529
        %1531 = vdwg.mxu0
        %v1532 = vld [vmem:[%s6] sm:$0xff]
        %v1533 = vld [vmem:[%s6 + $0x8] sm:$0xff]
        %v1534 = vld [vmem:[%s6 + $0x10] sm:$0xff]
        %v1535 = vld [vmem:[%s6 + $0x18] sm:$0xff]
        %v1536 = vld [vmem:[%s6 + $0x20] sm:$0xff]
        %v1537 = vld [vmem:[%s6 + $0x28] sm:$0xff]
        %v1538 = vld [vmem:[%s6 + $0x30] sm:$0xff]
        %v1539 = vld [vmem:[%s6 + $0x38] sm:$0xff]
        %v1540 = vld [vmem:[%s6 + $0x40] sm:$0xff]
        %v1541 = vld [vmem:[%s6 + $0x48] sm:$0xff]
        %v1542 = vld [vmem:[%s6 + $0x50] sm:$0xff]
        %v1543 = vld [vmem:[%s6 + $0x58] sm:$0xff]
        %v1544 = vld [vmem:[%s6 + $0x60] sm:$0xff]
        %v1545 = vld [vmem:[%s6 + $0x68] sm:$0xff]
        %v1546 = vld [vmem:[%s6 + $0x70] sm:$0xff]
        %v1547 = vld [vmem:[%s6 + $0x78] sm:$0xff]
        %v1548 = vmul.f32 %v1485, %v1532
        %v1549 = vmul.f32 %v1488, %v1533
        %v1550 = vmul.f32 %v1491, %v1534
        %v1551 = vmul.f32 %v1494, %v1535
        %v1552 = vmul.f32 %v1497, %v1536
        %v1553 = vmul.f32 %v1500, %v1537
        %v1554 = vmul.f32 %v1503, %v1538
        %v1555 = vmul.f32 %v1506, %v1539
        %v1556 = vmul.f32 %v1509, %v1540
        %v1557 = vmul.f32 %v1512, %v1541
        %v1558 = vmul.f32 %v1515, %v1542
        %v1559 = vmul.f32 %v1518, %v1543
        %v1560 = vmul.f32 %v1521, %v1544
        %v1561 = vmul.f32 %v1524, %v1545
        %v1562 = vmul.f32 %v1527, %v1546
        %v1563 = vmul.f32 %v1530, %v1547
        %1564 = vmatpush.msra.mxu0 %v1112
        %1565 = vmatpush.msra.mxu0 %v1110
        %1566 = vmatpush.msra.mxu0 %v1108
        %1567 = vmatpush.msra.mxu0 %v1106
        %1568 = vmatpush.msra.mxu0 %v1104
        %1569 = vmatpush.msra.mxu0 %v1102
        %1570 = vmatpush.msra.mxu0 %v1100
        %1571 = vmatpush.msra.mxu0 %v1098
        %1572 = vmatpush.msra.mxu0 %v1096
        %1573 = vmatpush.msra.mxu0 %v1094
        %1574 = vmatpush.msra.mxu0 %v1092
        %1575 = vmatpush.msra.mxu0 %v1090
        %1576 = vmatpush.msra.mxu0 %v1088
        %1577 = vmatpush.msra.mxu0 %v1086
        %1578 = vmatpush.msra.mxu0 %v1084
        %1579 = vmatpush.msra.mxu0 %v1082
        %1580 = vmatmul.f32.gmra.mxu0 %v1548
        %v1581 = vpop.f32.mrf.mxu0
        %v1582 = vadd.f32 0.0, %v1581
        %1583 = vmatmul.f32.gmra.mxu0 %v1549
        %v1584 = vpop.f32.mrf.mxu0
        %v1585 = vadd.f32 0.0, %v1584
        %1586 = vmatmul.f32.gmra.mxu0 %v1550
        %v1587 = vpop.f32.mrf.mxu0
        %v1588 = vadd.f32 0.0, %v1587
        %1589 = vmatmul.f32.gmra.mxu0 %v1551
        %v1590 = vpop.f32.mrf.mxu0
        %v1591 = vadd.f32 0.0, %v1590
        %1592 = vmatmul.f32.gmra.mxu0 %v1552
        %v1593 = vpop.f32.mrf.mxu0
        %v1594 = vadd.f32 0.0, %v1593
        %1595 = vmatmul.f32.gmra.mxu0 %v1553
        %v1596 = vpop.f32.mrf.mxu0
        %v1597 = vadd.f32 0.0, %v1596
        %1598 = vmatmul.f32.gmra.mxu0 %v1554
        %v1599 = vpop.f32.mrf.mxu0
        %v1600 = vadd.f32 0.0, %v1599
        %1601 = vmatmul.f32.gmra.mxu0 %v1555
        %v1602 = vpop.f32.mrf.mxu0
        %v1603 = vadd.f32 0.0, %v1602
        %1604 = vmatmul.f32.gmra.mxu0 %v1556
        %v1605 = vpop.f32.mrf.mxu0
        %v1606 = vadd.f32 0.0, %v1605
        %1607 = vmatmul.f32.gmra.mxu0 %v1557
        %v1608 = vpop.f32.mrf.mxu0
        %v1609 = vadd.f32 0.0, %v1608
        %1610 = vmatmul.f32.gmra.mxu0 %v1558
        %v1611 = vpop.f32.mrf.mxu0
        %v1612 = vadd.f32 0.0, %v1611
        %1613 = vmatmul.f32.gmra.mxu0 %v1559
        %v1614 = vpop.f32.mrf.mxu0
        %v1615 = vadd.f32 0.0, %v1614
        %1616 = vmatmul.f32.gmra.mxu0 %v1560
        %v1617 = vpop.f32.mrf.mxu0
        %v1618 = vadd.f32 0.0, %v1617
        %1619 = vmatmul.f32.gmra.mxu0 %v1561
        %v1620 = vpop.f32.mrf.mxu0
        %v1621 = vadd.f32 0.0, %v1620
        %1622 = vmatmul.f32.gmra.mxu0 %v1562
        %v1623 = vpop.f32.mrf.mxu0
        %v1624 = vadd.f32 0.0, %v1623
        %1625 = vmatmul.f32.gmra.mxu0 %v1563
        %v1626 = vpop.f32.mrf.mxu0
        %v1627 = vadd.f32 0.0, %v1626
        %1628 = vdwg.mxu0
        %1629 = vmatpush.msra.mxu0 %v1113
        %1630 = vmatpush.msra.mxu0 %v1111
        %1631 = vmatpush.msra.mxu0 %v1109
        %1632 = vmatpush.msra.mxu0 %v1107
        %1633 = vmatpush.msra.mxu0 %v1105
        %1634 = vmatpush.msra.mxu0 %v1103
        %1635 = vmatpush.msra.mxu0 %v1101
        %1636 = vmatpush.msra.mxu0 %v1099
        %1637 = vmatpush.msra.mxu0 %v1097
        %1638 = vmatpush.msra.mxu0 %v1095
        %1639 = vmatpush.msra.mxu0 %v1093
        %1640 = vmatpush.msra.mxu0 %v1091
        %1641 = vmatpush.msra.mxu0 %v1089
        %1642 = vmatpush.msra.mxu0 %v1087
        %1643 = vmatpush.msra.mxu0 %v1085
        %1644 = vmatpush.msra.mxu0 %v1083
        %1645 = vmatmul.f32.gmra.mxu0 %v1548
        %v1646 = vpop.f32.mrf.mxu0
        %v1647 = vadd.f32 0.0, %v1646
        %1648 = vmatmul.f32.gmra.mxu0 %v1549
        %v1649 = vpop.f32.mrf.mxu0
        %v1650 = vadd.f32 0.0, %v1649
        %1651 = vmatmul.f32.gmra.mxu0 %v1550
        %v1652 = vpop.f32.mrf.mxu0
        %v1653 = vadd.f32 0.0, %v1652
        %1654 = vmatmul.f32.gmra.mxu0 %v1551
        %v1655 = vpop.f32.mrf.mxu0
        %v1656 = vadd.f32 0.0, %v1655
        %1657 = vmatmul.f32.gmra.mxu0 %v1552
        %v1658 = vpop.f32.mrf.mxu0
        %v1659 = vadd.f32 0.0, %v1658
        %1660 = vmatmul.f32.gmra.mxu0 %v1553
        %v1661 = vpop.f32.mrf.mxu0
        %v1662 = vadd.f32 0.0, %v1661
        %1663 = vmatmul.f32.gmra.mxu0 %v1554
        %v1664 = vpop.f32.mrf.mxu0
        %v1665 = vadd.f32 0.0, %v1664
        %1666 = vmatmul.f32.gmra.mxu0 %v1555
        %v1667 = vpop.f32.mrf.mxu0
        %v1668 = vadd.f32 0.0, %v1667
        %1669 = vmatmul.f32.gmra.mxu0 %v1556
        %v1670 = vpop.f32.mrf.mxu0
        %v1671 = vadd.f32 0.0, %v1670
        %1672 = vmatmul.f32.gmra.mxu0 %v1557
        %v1673 = vpop.f32.mrf.mxu0
        %v1674 = vadd.f32 0.0, %v1673
        %1675 = vmatmul.f32.gmra.mxu0 %v1558
        %v1676 = vpop.f32.mrf.mxu0
        %v1677 = vadd.f32 0.0, %v1676
        %1678 = vmatmul.f32.gmra.mxu0 %v1559
        %v1679 = vpop.f32.mrf.mxu0
        %v1680 = vadd.f32 0.0, %v1679
        %1681 = vmatmul.f32.gmra.mxu0 %v1560
        %v1682 = vpop.f32.mrf.mxu0
        %v1683 = vadd.f32 0.0, %v1682
        %1684 = vmatmul.f32.gmra.mxu0 %v1561
        %v1685 = vpop.f32.mrf.mxu0
        %v1686 = vadd.f32 0.0, %v1685
        %1687 = vmatmul.f32.gmra.mxu0 %v1562
        %v1688 = vpop.f32.mrf.mxu0
        %v1689 = vadd.f32 0.0, %v1688
        %1690 = vmatmul.f32.gmra.mxu0 %v1563
        %v1691 = vpop.f32.mrf.mxu0
        %v1692 = vadd.f32 0.0, %v1691
        %1693 = vdwg.mxu0
        %v1694 = vld [vmem:[%s2] sm:$0xf]
        %v1695 = vld [vmem:[%s3] sm:$0xf]
        %1697 = vset.pattern.permute.xlu0 0
        %1698 = vperm.xlu0 %1697, %v1695
        %v1699 = vpop.permute.xlu0 %1698
        %1701 = vmatpush.msra.mxu0 %v1627
        %1702 = vmatpush.msra.mxu0 %v1624
        %1703 = vmatpush.msra.mxu0 %v1621
        %1704 = vmatpush.msra.mxu0 %v1618
        %1705 = vmatpush.msra.mxu0 %v1615
        %1706 = vmatpush.msra.mxu0 %v1612
        %1707 = vmatpush.msra.mxu0 %v1609
        %1708 = vmatpush.msra.mxu0 %v1606
        %1709 = vmatpush.msra.mxu0 %v1603
        %1710 = vmatpush.msra.mxu0 %v1600
        %1711 = vmatpush.msra.mxu0 %v1597
        %1712 = vmatpush.msra.mxu0 %v1594
        %1713 = vmatpush.msra.mxu0 %v1591
        %1714 = vmatpush.msra.mxu0 %v1588
        %1715 = vmatpush.msra.mxu0 %v1585
        %1716 = vmatpush.msra.mxu0 %v1582
        %1717 = vmatmul.f32.gmra.mxu0 %v1694
        %v1718 = vpop.f32.mrf.mxu0
        %v1719 = vadd.f32 %v1699, %v1718
        %1720 = vdwg.mxu0
        %1721 = vmatpush.msra.mxu0 %v1692
        %1722 = vmatpush.msra.mxu0 %v1689
        %1723 = vmatpush.msra.mxu0 %v1686
        %1724 = vmatpush.msra.mxu0 %v1683
        %1725 = vmatpush.msra.mxu0 %v1680
        %1726 = vmatpush.msra.mxu0 %v1677
        %1727 = vmatpush.msra.mxu0 %v1674
        %1728 = vmatpush.msra.mxu0 %v1671
        %1729 = vmatpush.msra.mxu0 %v1668
        %1730 = vmatpush.msra.mxu0 %v1665
        %1731 = vmatpush.msra.mxu0 %v1662
        %1732 = vmatpush.msra.mxu0 %v1659
        %1733 = vmatpush.msra.mxu0 %v1656
        %1734 = vmatpush.msra.mxu0 %v1653
        %1735 = vmatpush.msra.mxu0 %v1650
        %1736 = vmatpush.msra.mxu0 %v1647
        %1737 = vmatmul.f32.gmra.mxu0 %v1694
        %v1738 = vpop.f32.mrf.mxu0
        %v1739 = vadd.f32 %v1699, %v1738
        %1740 = vdwg.mxu0
        %v1741 = vsel %vm475, %v1719, 0.0
        %v1742 = vsel %vm475, %v1739, 0.0
        %v1743 = vadd.f32 %v1741, %v1742
        %1744 = vadd.xlane.f32.xlu0 %v1743
        %v1745 = vpop.xlane.xlu0 %1744
        %v1746 = vrot.slane %v1745, 4
        %v1747 = vadd.f32 %v1745, %v1746
        %v1748 = vrot.slane %v1747, 2
        %v1749 = vadd.f32 %v1747, %v1748
        %v1750 = vrot.slane %v1749, 1
        %v1751 = vadd.f32 %v1749, %v1750
        %s1752 = vtos %v1751
        %s1753 = smul.f32 %s1752, 0.0009765625
        %v1754 = vmul.f32 %v1719, %v1719
        %v1755 = vmul.f32 %v1739, %v1739
        %v1756 = vsel %vm475, %v1754, 0.0
        %v1757 = vsel %vm475, %v1755, 0.0
        %v1758 = vadd.f32 %v1756, %v1757
        %1759 = vadd.xlane.f32.xlu0 %v1758
        %v1760 = vpop.xlane.xlu0 %1759
        %v1761 = vrot.slane %v1760, 4
        %v1762 = vadd.f32 %v1760, %v1761
        %v1763 = vrot.slane %v1762, 2
        %v1764 = vadd.f32 %v1762, %v1763
        %v1765 = vrot.slane %v1764, 1
        %v1766 = vadd.f32 %v1764, %v1765
        %s1767 = vtos %v1766
        %s1768 = smul.f32 %s1767, 0.0009765625
        %s1769 = smul.f32 %s1753, %s1753
        %s1770 = ssub.f32 %s1768, %s1769
        %v1771 = vstv %s1753
        %v1772 = vsub.f32 %v1719, %v1771
        %v1773 = vsub.f32 %v1739, %v1771
        %s1774 = sadd.f32 %s1770, 1e-05
        %v1775 = vstv %s1774
        %v1776 = vrsqrt.pop %v1775
        %v1777 = vmul.f32 %v1776, %v1775
        %v1778 = vmul.f32 %v1777, %v1776
        %v1779 = vmul.f32 0.5, %v1778
        %v1780 = vsub.f32 1.5, %v1779
        %v1781 = vmul.f32 %v1776, %v1780
        %vm1782 = vweird.f32 %v1775
        %vm1783 = vweird.f32 %v1776
        %vm1784 = vmor %vm1782, %vm1783
        %v1785 = vsel %vm1784, %v1776, %v1781
        %s1786 = vtos %v1785
        %v1787 = vstv %s1786
        %v1788 = vmul.f32 %v1772, %v1787
        %v1789 = vmul.f32 %v1773, %v1787
        %v1790 = vld [vmem:[%s4] sm:$0xf]
        %1792 = vset.pattern.permute.xlu0 0
        %1793 = vperm.xlu0 %1792, %v1790
        %v1794 = vpop.permute.xlu0 %1793
        %v1796 = vmul.f32 %v1788, %v1794
        %v1797 = vmul.f32 %v1789, %v1794
        %v1798 = vld [vmem:[%s5] sm:$0xf]
        %1800 = vset.pattern.permute.xlu0 0
        %1801 = vperm.xlu0 %1800, %v1798
        %v1802 = vpop.permute.xlu0 %1801
        %v1804 = vadd.f32 %v1796, %v1802
        %v1805 = vadd.f32 %v1797, %v1802
        %v1808 = vrot.slane %v1805, 4
        %v1809 = vsel %vm475, %v1804, %v1808
        %1811 = vst [vmem:[%s271] sm:$0xff] %v1809
        %s1812 = sand.u32 %s181, 1
        %s1813 = scalar_lea.sflag [#allocation3], %s1812
        %s1814 = sand.u32 %s181, 1
        %s1815 = smul.addr %s1814, 8
        %s1816 = scalar_lea.vmem [#allocation2], %s1815
        // Predicated region
        $region49: #{tpu_custom_call.1} parent=47 // pred_check
          %p1817 = pneg %p191
        $region50: #{tpu_custom_call.1} parent=47 // pred_check_branch
          %1819 = sbr.rel (%p1817) target = $region52
        $region51: #{tpu_custom_call.1} parent=47 // pred_region
          %1821 = vsyncadd %s1813, 0
          %s1822 = smul.addr %s21, 2
          %s1823 = smul.addr %s1822, 4
          %s1824 = scalar_lea.hbm %s7, %s1823
          %s1826 = sshll.u32 %s1816, 4
          %s1827 = int_to_ptr.vmem [resolvable:$true] %s1826
          %s1828 = sshll.u32 %s1824, 4
          %s1829 = int_to_ptr.hbm [resolvable:$true] %s1828
          %1831 = dma.vmem_to_hbm [thread:$0]  %s1827, 128, %s1829, %s1813
        $region52: #{tpu_custom_call.1} parent=47 // pred_fallthru
          _
      $region48: #{tpu_custom_call.1} parent=5 // pred_fallthru
        _
      %p1832 = scmp.le.s32.totalorder 2, %s16
      // Predicated region
      $region53: #{tpu_custom_call.1} parent=5 // pred_check
        %p1833 = pneg %p1832
      $region54: #{tpu_custom_call.1} parent=5 // pred_check_branch
        %1835 = sbr.rel (%p1833) target = $region56
      $region55: #{tpu_custom_call.1} parent=5 // pred_region
        %s1836 = ssub.s32 %s16, 2
        // Predicated region
        $region57: #{tpu_custom_call.1} parent=55 // pred_check
          %p1837 = pneg %p197
        $region58: #{tpu_custom_call.1} parent=55 // pred_check_branch
          %1839 = sbr.rel (%p1837) target = $region60
        $region59: #{tpu_custom_call.1} parent=55 // pred_region
          %s1840 = sand.u32 %s182, 1
          %s1841 = scalar_lea.sflag [#allocation3], %s1840
          %s1842 = sand.u32 %s182, 1
          %s1843 = smul.addr %s1842, 8
          %s1844 = scalar_lea.vmem [#allocation2], %s1843
          %1846 = dma.done %s1841, 128
        $region60: #{tpu_custom_call.1} parent=55 // pred_fallthru
          _
      $region56: #{tpu_custom_call.1} parent=5 // pred_fallthru
        _
    $region6: #{tpu_custom_call.1} parent=1 // loop_footer
      %s20 = sadd.s32 1, %s16
    $region7: #{tpu_custom_call.1} parent=1 // loop_footer_branch
      %15 = sbr.rel target = $region3
    $region8: #{tpu_custom_call.1} parent=1 // loop_exit
      _
    %1847 = vsyncpa [#allocation3], 1
    %s1848 = scalar_lea.sflag [#allocation3], 1
    %1849 = vsyncpa %s1848, 1

</llo_original>
